<compile_context>
chip_gen: v6e
topology: v6e:2x2x1
jax: 0.10.0
libtpu: 0.0.40
codegen_flags: <defaults>
</compile_context>

<pallas_src>
import numpy as np
import jax
import jax.numpy as jnp
from jax.experimental import pallas as pl
from jax.experimental.pallas import tpu as pltpu


# ----------------------------------------------------------------------------
# Small helpers (bilinear matrix is used only by the pure-JAX reference).
# ----------------------------------------------------------------------------
def _bilinear_upsample_matrix(in_size: int, scale: int = 2) -> np.ndarray:
    """nn.Upsample(scale_factor=scale, mode='bilinear', align_corners=False) as a matrix."""
    out_size = in_size * scale
    m = np.zeros((out_size, in_size), dtype=np.float32)
    for o in range(out_size):
        src = (o + 0.5) / scale - 0.5
        src = max(src, 0.0)
        i0 = min(int(np.floor(src)), in_size - 1)
        lam = src - i0
        i1 = min(i0 + 1, in_size - 1)
        m[o, i0] += 1.0 - lam
        m[o, i1] += lam
    return m


def _fold_bn(gamma, beta, mean, var, eps=1e-5):
    scale = gamma / jnp.sqrt(var + eps)
    shift = beta - mean * scale
    return scale, shift


def _upsample_blend_coefs(H: int, W: int) -> np.ndarray:
    """Per-lane blend coefficients for the 4-tap scale-2 bilinear upsample.

    Output sub-grid value = (1-c)*z + c*z_shifted with c = 0.25 in the interior
    and c = 0 at the clamped edge, so the edge clamp needs no special shift.
    Rows: [cHm (row i-1), cHp (row i+1), cWm (col j-1), cWp (col j+1)].
    """
    lane = np.arange(H * W)
    i = lane // W
    j = lane % W
    cHm = np.where(i >= 1, 0.25, 0.0)
    cHp = np.where(i <= H - 2, 0.25, 0.0)
    cWm = np.where(j >= 1, 0.25, 0.0)
    cWp = np.where(j <= W - 2, 0.25, 0.0)
    return np.stack([cHm, cHp, cWm, cWp]).astype(np.float32)       # (4, H*W)


# ----------------------------------------------------------------------------
# Kernel (one batch element per grid step; rows = channels, lanes = H*W).
# ----------------------------------------------------------------------------
def _make_kernel(C: int, H: int, W: int):
    HW = H * W
    bf16 = jnp.bfloat16
    f32 = jnp.float32

    def kernel(x_ref, bn1s_ref, bn1b_ref, w1_ref, b1_ref, wt_ref, bt_ref,
               wbt_ref, wct_ref, coef_ref, bfin_ref,
               out_ref, zpad_ref, wpad_ref):
        x = x_ref[0]                                                # (C, HW) f32

        # ---- conv1 prefix: BN1 -> ReLU -> 1x1 conv (+BN2 folded) -> ReLU ----
        t0 = jnp.maximum(x * bn1s_ref[...] + bn1b_ref[...], 0.0)
        t1 = jnp.maximum(
            jnp.dot(w1_ref[...], t0.astype(bf16),
                    preferred_element_type=f32) + b1_ref[...], 0.0)  # (C, HW)
        t1b = t1.astype(bf16)
        bT_b = jnp.broadcast_to(bt_ref[...], (C, HW))               # hoisted once

        # ---- identity branch: 1x1 conv (+BN4 folded) then 2x bilinear up ----
        # The 1x1 conv commutes with the spatial upsample; the per-channel
        # shift bfin (conv1[8] bias + BN4-adjusted conv0 bias) is added once
        # here and rides through the (affine, weights-sum-to-1) upsample blend.
        z = jnp.dot(wct_ref[...], x.astype(bf16),
                    preferred_element_type=f32) + bfin_ref[...]     # (C, HW)

        # Row (H) direction +-1 shifts via offset loads from padded scratch;
        # wrap/edge lanes hold zeros but their blend coefficient is zero.
        zpad_ref[...] = jnp.zeros(zpad_ref.shape, f32)
        zpad_ref[:, pl.ds(W, HW)] = z
        zm = zpad_ref[:, pl.ds(0, HW)]                              # row i-1
        zp = zpad_ref[:, pl.ds(2 * W, HW)]                          # row i+1

        cHm = coef_ref[0:1, :]
        cHp = coef_ref[1:2, :]
        cWm = coef_ref[2:3, :]
        cWp = coef_ref[3:4, :]

        zh0 = z + cHm * (zm - z)                                    # output rows 2i
        zh1 = z + cHp * (zp - z)                                    # output rows 2i+1

        # Column (W) direction +-1 shifts, same padded-scratch trick.
        wpad_ref[...] = jnp.zeros(wpad_ref.shape, f32)
        wpad_ref[0, :, pl.ds(1, HW)] = zh0
        wpad_ref[1, :, pl.ds(1, HW)] = zh1

        for di, zh in ((0, zh0), (1, zh1)):
            wm = wpad_ref[di, :, pl.ds(0, HW)]                      # col j-1
            wp = wpad_ref[di, :, pl.ds(2, HW)]                      # col j+1
            idens = (zh + cWm * (wm - zh),                          # dj = 0
                     zh + cWp * (wp - zh))                          # dj = 1
            for dj in range(2):
                s = di * 2 + dj
                # ConvTranspose2d(k=2,s=2) sub-grid s (+BN3 folded) -> ReLU
                y = jnp.maximum(
                    jnp.dot(wt_ref[s], t1b, preferred_element_type=f32) + bT_b,
                    0.0)
                # final 1x1 conv of conv1 (its bias is folded into bfin via z)
                y = jnp.dot(wbt_ref[...], y.astype(bf16),
                            preferred_element_type=f32)
                out_ref[0, s] = y + idens[dj]

    return kernel


# ----------------------------------------------------------------------------
# One-time parameter folding (do NOT rebuild per forward call).
# ----------------------------------------------------------------------------
def fold_operands(p, C: int, H: int, W: int):
    f32, bf16 = jnp.float32, jnp.bfloat16
    s2, h2 = p["bn2s"], p["bn2b"]
    s3, h3 = p["bn3s"], p["bn3b"]
    s4, h4 = p["bn4s"], p["bn4b"]

    bn1s = p["bn1s"].reshape(C, 1).astype(f32)
    bn1b = p["bn1b"].reshape(C, 1).astype(f32)

    # conv1[2] 1x1 with BN2 folded.
    W1 = (s2[:, None] * p["wa"].T).astype(bf16)                     # (C, C)
    b1 = (s2 * p["ba"] + h2).reshape(C, 1).astype(f32)

    # ConvTranspose2d(k=2,s=2) with BN3 folded; one (C,C) weight per sub-grid.
    wt = p["wt"]                                                    # (ci, co, kh, kw)
    WT = jnp.stack([s3[:, None] * wt[:, :, di, dj].T
                    for di in range(2) for dj in range(2)], axis=0).astype(bf16)  # (4,C,C)
    bT = (s3 * p["bt"] + h3).reshape(C, 1).astype(f32)

    WBt = p["wb"].T.astype(bf16)                                    # conv1[8] 1x1
    WCt = (s4[:, None] * p["wc"].T).astype(bf16)                    # conv0 1x1, BN4 scale folded

    # per-channel output shift: conv1[8] bias + BN4-adjusted conv0 bias.
    bfin = (p["bb"] + s4 * p["bc"] + h4).reshape(C, 1).astype(f32)

    coefs = jnp.asarray(_upsample_blend_coefs(H, W))                # (4, HW) f32
    return (bn1s, bn1b, W1, b1, WT, bT, WBt, WCt, coefs, bfin)


def build_apply(N: int, C: int, H: int, W: int):
    HW = H * W
    kernel = _make_kernel(C, H, W)
    const2 = lambda b: (0, 0)
    const3 = lambda b: (0, 0, 0)

    call = pl.pallas_call(
        kernel,
        grid=(N,),
        in_specs=[
            pl.BlockSpec((1, C, HW), lambda b: (b, 0, 0)),          # x  (per batch)
            pl.BlockSpec((C, 1), const2),                           # bn1 scale
            pl.BlockSpec((C, 1), const2),                           # bn1 shift
            pl.BlockSpec((C, C), const2),                           # W1   (bf16)
            pl.BlockSpec((C, 1), const2),                           # b1
            pl.BlockSpec((4, C, C), const3),                        # WT   (bf16)
            pl.BlockSpec((C, 1), const2),                           # bT
            pl.BlockSpec((C, C), const2),                           # WBt  (bf16)
            pl.BlockSpec((C, C), const2),                           # WCt  (bf16)
            pl.BlockSpec((4, HW), const2),                          # blend coefs
            pl.BlockSpec((C, 1), const2),                           # bfin
        ],
        out_specs=pl.BlockSpec((1, 4, C, HW), lambda b: (b, 0, 0, 0)),
        out_shape=jax.ShapeDtypeStruct((N, 4, C, HW), jnp.float32),
        scratch_shapes=[
            pltpu.VMEM((C, HW + 2 * W), jnp.float32),               # H-shift pad buffer
            pltpu.VMEM((2, C, HW + 2), jnp.float32),                # W-shift pad buffers
        ],
        compiler_params=pltpu.CompilerParams(
            dimension_semantics=("parallel",)),                     # batch -> 2nd TC on v7x
    )

    @jax.jit
    def apply(x_nchw, ops):
        x2 = x_nchw.reshape(N, C, HW).astype(jnp.float32)           # NCHW is already (n,c)-major
        out = call(x2, *ops)                                        # (N, 4, C, HW)
        out = out.reshape(N, 2, 2, C, H, W)
        out = out.transpose(0, 3, 4, 1, 5, 2).reshape(N, C, 2 * H, 2 * W)
        return out

    return apply


# ----------------------------------------------------------------------------
# Pure-JAX reference reproducing the PyTorch forward (eval-mode BN).
# ----------------------------------------------------------------------------
def reference_nchw(x_nchw, p, afull, bfull):
    x = jnp.transpose(x_nchw, (0, 2, 3, 1))                         # NHWC
    relu = lambda v: jnp.maximum(v, 0.0)
    # conv1 branch
    t = relu(x * p["bn1s"] + p["bn1b"])
    t = jnp.einsum("nhwc,cd->nhwd", t, p["wa"]) + p["ba"]
    t = relu(t * p["bn2s"] + p["bn2b"])
    y = jnp.einsum("nhwc,cokl->nhkwlo", t, p["wt"])                 # ConvTranspose2d k=2,s=2
    N, H, _, W, _, O = y.shape
    y = y.reshape(N, 2 * H, 2 * W, O) + p["bt"]
    y = relu(y * p["bn3s"] + p["bn3b"])
    y = jnp.einsum("nhwc,cd->nhwd", y, p["wb"]) + p["bb"]
    # conv0 branch (upsample -> 1x1 conv -> BN)
    u = jnp.einsum("ph,nhwc->npwc", afull, x)
    u = jnp.einsum("qw,npwc->npqc", bfull, u)
    iden = jnp.einsum("npqc,cd->npqd", u, p["wc"]) + p["bc"]
    iden = iden * p["bn4s"] + p["bn4b"]
    return jnp.transpose(y + iden, (0, 3, 1, 2))                    # back to NCHW


if __name__ == "__main__":
    N, Cin, Cout, H, W = 2, 4, 4, 16, 16
    assert Cin == Cout, "BatchNorm2d(in_channels) inside conv1 requires Cin == Cout"

    key = jax.random.PRNGKey(0)
    kit = iter(jax.random.split(key, 32))

    def nrm(shape, scale=0.3):
        return scale * jax.random.normal(next(kit), shape, jnp.float32)

    def bn(c):
        gamma = 0.5 + jax.random.uniform(next(kit), (c,), jnp.float32)
        beta = nrm((c,), 0.1)
        mean = nrm((c,), 0.1)
        var = 0.5 + jax.random.uniform(next(kit), (c,), jnp.float32)
        return _fold_bn(gamma, beta, mean, var)

    x = jax.random.normal(next(kit), (N, Cin, H, W), jnp.float32)   # NCHW, as in PyTorch

    bn1s, bn1b = bn(Cin)
    wa, ba = nrm((Cin, Cout)), nrm((Cout,), 0.1)                    # Conv2d 1x1 (conv1[2])
    bn2s, bn2b = bn(Cin)                                            # BatchNorm2d(in_channels)
    wt = nrm((Cout, Cout, 2, 2))                                    # ConvTranspose2d (in,out,kH,kW)
    bt = nrm((Cout,), 0.1)
    bn3s, bn3b = bn(Cout)
    wb, bb = nrm((Cout, Cout)), nrm((Cout,), 0.1)                   # Conv2d 1x1 (conv1[8])
    wc, bc = nrm((Cin, Cout)), nrm((Cout,), 0.1)                    # Conv2d 1x1 (conv0[1])
    bn4s, bn4b = bn(Cout)

    params = dict(bn1s=bn1s, bn1b=bn1b, wa=wa, ba=ba, bn2s=bn2s, bn2b=bn2b,
                  wt=wt, bt=bt, bn3s=bn3s, bn3b=bn3b, wb=wb, bb=bb,
                  wc=wc, bc=bc, bn4s=bn4s, bn4b=bn4b)

    # Fold weights ONCE, build the pallas_call ONCE, then apply.
    ops = fold_operands(params, Cout, H, W)
    apply = build_apply(N, Cout, H, W)

    out = jax.block_until_ready(apply(x, ops))

    afull = jnp.asarray(_bilinear_upsample_matrix(H, 2))
    bfull = jnp.asarray(_bilinear_upsample_matrix(W, 2))
    ref = reference_nchw(x, params, afull, bfull)
    assert out.shape == (N, Cout, 2 * H, 2 * W), out.shape
    # bf16 matmul operands (f32 accumulation) -> loosened tolerance vs f32 reference.
    np.testing.assert_allclose(np.asarray(out), np.asarray(ref), rtol=5e-2, atol=5e-2)
    print("KERNEL_OK")
</pallas_src>

<mosaic_0001>
module attributes {stable_mosaic.version = 11 : i64} {
  func.func @kernel(%arg0: i32, %arg1: memref<1x4x256xf32, #tpu.memory_space<vmem>>, %arg2: memref<4x1xf32, #tpu.memory_space<vmem>>, %arg3: memref<4x1xf32, #tpu.memory_space<vmem>>, %arg4: memref<4x4xbf16, #tpu.memory_space<vmem>>, %arg5: memref<4x1xf32, #tpu.memory_space<vmem>>, %arg6: memref<4x4x4xbf16, #tpu.memory_space<vmem>>, %arg7: memref<4x1xf32, #tpu.memory_space<vmem>>, %arg8: memref<4x4xbf16, #tpu.memory_space<vmem>>, %arg9: memref<4x4xbf16, #tpu.memory_space<vmem>>, %arg10: memref<4x256xf32, #tpu.memory_space<vmem>>, %arg11: memref<4x1xf32, #tpu.memory_space<vmem>>, %arg12: memref<1x4x4x256xf32, #tpu.memory_space<vmem>>, %arg13: memref<4x288xf32, #tpu.memory_space<vmem>>, %arg14: memref<2x4x258xf32, #tpu.memory_space<vmem>>) attributes {dimension_semantics = [#tpu.dimension_semantics<parallel>], iteration_bounds = array<i64: 2>, scalar_prefetch = 0 : i64, scratch_operands = 2 : i64, tpu.core_type = #tpu.core_type<tc>, window_params = [{transform_indices = @transform_0, window_bounds = array<i64: 1, 4, 256>}, {pipeline_mode = #tpu.pipeline_mode<synchronous>, transform_indices = @transform_1, window_bounds = array<i64: 4, 1>}, {pipeline_mode = #tpu.pipeline_mode<synchronous>, transform_indices = @transform_2, window_bounds = array<i64: 4, 1>}, {pipeline_mode = #tpu.pipeline_mode<synchronous>, transform_indices = @transform_3, window_bounds = array<i64: 4, 4>}, {pipeline_mode = #tpu.pipeline_mode<synchronous>, transform_indices = @transform_4, window_bounds = array<i64: 4, 1>}, {pipeline_mode = #tpu.pipeline_mode<synchronous>, transform_indices = @transform_5, window_bounds = array<i64: 4, 4, 4>}, {pipeline_mode = #tpu.pipeline_mode<synchronous>, transform_indices = @transform_6, window_bounds = array<i64: 4, 1>}, {pipeline_mode = #tpu.pipeline_mode<synchronous>, transform_indices = @transform_7, window_bounds = array<i64: 4, 4>}, {pipeline_mode = #tpu.pipeline_mode<synchronous>, transform_indices = @transform_8, window_bounds = array<i64: 4, 4>}, {pipeline_mode = #tpu.pipeline_mode<synchronous>, transform_indices = @transform_9, window_bounds = array<i64: 4, 256>}, {pipeline_mode = #tpu.pipeline_mode<synchronous>, transform_indices = @transform_10, window_bounds = array<i64: 4, 1>}, {transform_indices = @transform_11, window_bounds = array<i64: 1, 4, 4, 256>}]} {
    %c0 = arith.constant 0 : index
    %c0_0 = arith.constant 0 : index
    %c0_1 = arith.constant 0 : index
    %0 = vector.load %arg1[%c0, %c0_0, %c0_1] : memref<1x4x256xf32, #tpu.memory_space<vmem>>, vector<1x4x256xf32>
    %1 = vector.shape_cast %0 : vector<1x4x256xf32> to vector<4x256xf32>
    %c0_2 = arith.constant 0 : index
    %c0_3 = arith.constant 0 : index
    %2 = vector.load %arg2[%c0_2, %c0_3] : memref<4x1xf32, #tpu.memory_space<vmem>>, vector<4x1xf32>
    %3 = vector.broadcast %2 : vector<4x1xf32> to vector<4x256xf32>
    %4 = arith.mulf %1, %3 : vector<4x256xf32>
    %c0_4 = arith.constant 0 : index
    %c0_5 = arith.constant 0 : index
    %5 = vector.load %arg3[%c0_4, %c0_5] : memref<4x1xf32, #tpu.memory_space<vmem>>, vector<4x1xf32>
    %6 = vector.broadcast %5 : vector<4x1xf32> to vector<4x256xf32>
    %7 = arith.addf %4, %6 : vector<4x256xf32>
    %cst = arith.constant 0.000000e+00 : f32
    %8 = vector.broadcast %cst : f32 to vector<4x256xf32>
    %9 = arith.maximumf %7, %8 : vector<4x256xf32>
    %c0_6 = arith.constant 0 : index
    %c0_7 = arith.constant 0 : index
    %10 = vector.load %arg4[%c0_6, %c0_7] : memref<4x4xbf16, #tpu.memory_space<vmem>>, vector<4x4xbf16>
    %11 = arith.truncf %9 : vector<4x256xf32> to vector<4x256xbf16>
    %cst_8 = arith.constant dense<0.000000e+00> : vector<4x256xf32>
    %12 = tpu.matmul %10, %11, %cst_8 {dimension_numbers = #tpu.dot_dimension_numbers<[1], [0], [0], [1], [0, 0, 1, 1], [], []>} : vector<4x4xbf16>, vector<4x256xbf16>, vector<4x256xf32> -> vector<4x256xf32>
    %c0_9 = arith.constant 0 : index
    %c0_10 = arith.constant 0 : index
    %13 = vector.load %arg5[%c0_9, %c0_10] : memref<4x1xf32, #tpu.memory_space<vmem>>, vector<4x1xf32>
    %14 = vector.broadcast %13 : vector<4x1xf32> to vector<4x256xf32>
    %15 = arith.addf %12, %14 : vector<4x256xf32>
    %cst_11 = arith.constant 0.000000e+00 : f32
    %16 = vector.broadcast %cst_11 : f32 to vector<4x256xf32>
    %17 = arith.maximumf %15, %16 : vector<4x256xf32>
    %18 = arith.truncf %17 : vector<4x256xf32> to vector<4x256xbf16>
    %c0_12 = arith.constant 0 : index
    %c0_13 = arith.constant 0 : index
    %19 = vector.load %arg7[%c0_12, %c0_13] : memref<4x1xf32, #tpu.memory_space<vmem>>, vector<4x1xf32>
    %20 = vector.shape_cast %19 : vector<4x1xf32> to vector<4x1xf32>
    %21 = vector.broadcast %20 : vector<4x1xf32> to vector<4x256xf32>
    %c0_14 = arith.constant 0 : index
    %c0_15 = arith.constant 0 : index
    %22 = vector.load %arg9[%c0_14, %c0_15] : memref<4x4xbf16, #tpu.memory_space<vmem>>, vector<4x4xbf16>
    %23 = arith.truncf %1 : vector<4x256xf32> to vector<4x256xbf16>
    %cst_16 = arith.constant dense<0.000000e+00> : vector<4x256xf32>
    %24 = tpu.matmul %22, %23, %cst_16 {dimension_numbers = #tpu.dot_dimension_numbers<[1], [0], [0], [1], [0, 0, 1, 1], [], []>} : vector<4x4xbf16>, vector<4x256xbf16>, vector<4x256xf32> -> vector<4x256xf32>
    %c0_17 = arith.constant 0 : index
    %c0_18 = arith.constant 0 : index
    %25 = vector.load %arg11[%c0_17, %c0_18] : memref<4x1xf32, #tpu.memory_space<vmem>>, vector<4x1xf32>
    %26 = vector.broadcast %25 : vector<4x1xf32> to vector<4x256xf32>
    %27 = arith.addf %24, %26 : vector<4x256xf32>
    %cst_19 = arith.constant 0.000000e+00 : f32
    %28 = vector.broadcast %cst_19 : f32 to vector<4x288xf32>
    %c0_20 = arith.constant 0 : index
    %c0_21 = arith.constant 0 : index
    %29 = vector.load %arg13[%c0_20, %c0_21] : memref<4x288xf32, #tpu.memory_space<vmem>>, vector<4x288xf32>
    tpu.vector_store %arg13[%c0_20, %c0_21], %28 {strides = array<i32>} : memref<4x288xf32, #tpu.memory_space<vmem>>, vector<4x288xf32>,
    %c0_22 = arith.constant 0 : index
    %c16 = arith.constant 16 : index
    %30 = vector.load %arg13[%c0_22, %c16] : memref<4x288xf32, #tpu.memory_space<vmem>>, vector<4x256xf32>
    tpu.vector_store %arg13[%c0_22, %c16], %27 {strides = array<i32>} : memref<4x288xf32, #tpu.memory_space<vmem>>, vector<4x256xf32>,
    %c0_23 = arith.constant 0 : index
    %c0_24 = arith.constant 0 : index
    %31 = vector.load %arg13[%c0_23, %c0_24] : memref<4x288xf32, #tpu.memory_space<vmem>>, vector<4x256xf32>
    %c0_25 = arith.constant 0 : index
    %c32 = arith.constant 32 : index
    %32 = vector.load %arg13[%c0_25, %c32] : memref<4x288xf32, #tpu.memory_space<vmem>>, vector<4x256xf32>
    %c0_26 = arith.constant 0 : index
    %c0_27 = arith.constant 0 : index
    %33 = vector.load %arg10[%c0_26, %c0_27] : memref<4x256xf32, #tpu.memory_space<vmem>>, vector<1x256xf32>
    %c1 = arith.constant 1 : index
    %c0_28 = arith.constant 0 : index
    %34 = vector.load %arg10[%c1, %c0_28] : memref<4x256xf32, #tpu.memory_space<vmem>>, vector<1x256xf32>
    %c2 = arith.constant 2 : index
    %c0_29 = arith.constant 0 : index
    %35 = vector.load %arg10[%c2, %c0_29] : memref<4x256xf32, #tpu.memory_space<vmem>>, vector<1x256xf32>
    %c3 = arith.constant 3 : index
    %c0_30 = arith.constant 0 : index
    %36 = vector.load %arg10[%c3, %c0_30] : memref<4x256xf32, #tpu.memory_space<vmem>>, vector<1x256xf32>
    %37 = arith.subf %31, %27 : vector<4x256xf32>
    %38 = vector.broadcast %33 : vector<1x256xf32> to vector<4x256xf32>
    %39 = arith.mulf %38, %37 : vector<4x256xf32>
    %40 = arith.addf %27, %39 : vector<4x256xf32>
    %41 = arith.subf %32, %27 : vector<4x256xf32>
    %42 = vector.broadcast %34 : vector<1x256xf32> to vector<4x256xf32>
    %43 = arith.mulf %42, %41 : vector<4x256xf32>
    %44 = arith.addf %27, %43 : vector<4x256xf32>
    %cst_31 = arith.constant 0.000000e+00 : f32
    %45 = vector.broadcast %cst_31 : f32 to vector<2x4x258xf32>
    %c0_32 = arith.constant 0 : index
    %c0_33 = arith.constant 0 : index
    %c0_34 = arith.constant 0 : index
    %46 = vector.load %arg14[%c0_32, %c0_33, %c0_34] : memref<2x4x258xf32, #tpu.memory_space<vmem>>, vector<2x4x258xf32>
    tpu.vector_store %arg14[%c0_32, %c0_33, %c0_34], %45 {strides = array<i32>} : memref<2x4x258xf32, #tpu.memory_space<vmem>>, vector<2x4x258xf32>,
    %c0_35 = arith.constant 0 : index
    %c0_36 = arith.constant 0 : index
    %c1_37 = arith.constant 1 : index
    %47 = vector.load %arg14[%c0_35, %c0_36, %c1_37] : memref<2x4x258xf32, #tpu.memory_space<vmem>>, vector<1x4x256xf32>
    %48 = vector.shape_cast %47 : vector<1x4x256xf32> to vector<4x256xf32>
    %49 = vector.shape_cast %40 : vector<4x256xf32> to vector<1x4x256xf32>
    tpu.vector_store %arg14[%c0_35, %c0_36, %c1_37], %49 {strides = array<i32>} : memref<2x4x258xf32, #tpu.memory_space<vmem>>, vector<1x4x256xf32>,
    %c1_38 = arith.constant 1 : index
    %c0_39 = arith.constant 0 : index
    %c1_40 = arith.constant 1 : index
    %50 = vector.load %arg14[%c1_38, %c0_39, %c1_40] : memref<2x4x258xf32, #tpu.memory_space<vmem>>, vector<1x4x256xf32>
    %51 = vector.shape_cast %50 : vector<1x4x256xf32> to vector<4x256xf32>
    %52 = vector.shape_cast %44 : vector<4x256xf32> to vector<1x4x256xf32>
    tpu.vector_store %arg14[%c1_38, %c0_39, %c1_40], %52 {strides = array<i32>} : memref<2x4x258xf32, #tpu.memory_space<vmem>>, vector<1x4x256xf32>,
    %c0_41 = arith.constant 0 : index
    %c0_42 = arith.constant 0 : index
    %c0_43 = arith.constant 0 : index
    %53 = vector.load %arg14[%c0_41, %c0_42, %c0_43] : memref<2x4x258xf32, #tpu.memory_space<vmem>>, vector<1x4x256xf32>
    %54 = vector.shape_cast %53 : vector<1x4x256xf32> to vector<4x256xf32>
    %c0_44 = arith.constant 0 : index
    %c0_45 = arith.constant 0 : index
    %c2_46 = arith.constant 2 : index
    %55 = vector.load %arg14[%c0_44, %c0_45, %c2_46] : memref<2x4x258xf32, #tpu.memory_space<vmem>>, vector<1x4x256xf32>
    %56 = vector.shape_cast %55 : vector<1x4x256xf32> to vector<4x256xf32>
    %57 = arith.subf %54, %40 : vector<4x256xf32>
    %58 = vector.broadcast %35 : vector<1x256xf32> to vector<4x256xf32>
    %59 = arith.mulf %58, %57 : vector<4x256xf32>
    %60 = arith.addf %40, %59 : vector<4x256xf32>
    %61 = arith.subf %56, %40 : vector<4x256xf32>
    %62 = vector.broadcast %36 : vector<1x256xf32> to vector<4x256xf32>
    %63 = arith.mulf %62, %61 : vector<4x256xf32>
    %64 = arith.addf %40, %63 : vector<4x256xf32>
    %c0_47 = arith.constant 0 : index
    %c0_48 = arith.constant 0 : index
    %c0_49 = arith.constant 0 : index
    %65 = vector.load %arg6[%c0_47, %c0_48, %c0_49] : memref<4x4x4xbf16, #tpu.memory_space<vmem>>, vector<1x4x4xbf16>
    %66 = vector.shape_cast %65 : vector<1x4x4xbf16> to vector<4x4xbf16>
    %cst_50 = arith.constant dense<0.000000e+00> : vector<4x256xf32>
    %67 = tpu.matmul %66, %18, %cst_50 {dimension_numbers = #tpu.dot_dimension_numbers<[1], [0], [0], [1], [0, 0, 1, 1], [], []>} : vector<4x4xbf16>, vector<4x256xbf16>, vector<4x256xf32> -> vector<4x256xf32>
    %68 = arith.addf %67, %21 : vector<4x256xf32>
    %cst_51 = arith.constant 0.000000e+00 : f32
    %69 = vector.broadcast %cst_51 : f32 to vector<4x256xf32>
    %70 = arith.maximumf %68, %69 : vector<4x256xf32>
    %c0_52 = arith.constant 0 : index
    %c0_53 = arith.constant 0 : index
    %71 = vector.load %arg8[%c0_52, %c0_53] : memref<4x4xbf16, #tpu.memory_space<vmem>>, vector<4x4xbf16>
    %72 = arith.truncf %70 : vector<4x256xf32> to vector<4x256xbf16>
    %cst_54 = arith.constant dense<0.000000e+00> : vector<4x256xf32>
    %73 = tpu.matmul %71, %72, %cst_54 {dimension_numbers = #tpu.dot_dimension_numbers<[1], [0], [0], [1], [0, 0, 1, 1], [], []>} : vector<4x4xbf16>, vector<4x256xbf16>, vector<4x256xf32> -> vector<4x256xf32>
    %74 = arith.addf %73, %60 : vector<4x256xf32>
    %c0_55 = arith.constant 0 : index
    %c0_56 = arith.constant 0 : index
    %c0_57 = arith.constant 0 : index
    %c0_58 = arith.constant 0 : index
    %75 = vector.load %arg12[%c0_55, %c0_56, %c0_57, %c0_58] : memref<1x4x4x256xf32, #tpu.memory_space<vmem>>, vector<1x1x4x256xf32>
    %76 = vector.shape_cast %75 : vector<1x1x4x256xf32> to vector<4x256xf32>
    %77 = vector.shape_cast %74 : vector<4x256xf32> to vector<1x1x4x256xf32>
    tpu.vector_store %arg12[%c0_55, %c0_56, %c0_57, %c0_58], %77 {strides = array<i32>} : memref<1x4x4x256xf32, #tpu.memory_space<vmem>>, vector<1x1x4x256xf32>,
    %c1_59 = arith.constant 1 : index
    %c0_60 = arith.constant 0 : index
    %c0_61 = arith.constant 0 : index
    %78 = vector.load %arg6[%c1_59, %c0_60, %c0_61] : memref<4x4x4xbf16, #tpu.memory_space<vmem>>, vector<1x4x4xbf16>
    %79 = vector.shape_cast %78 : vector<1x4x4xbf16> to vector<4x4xbf16>
    %cst_62 = arith.constant dense<0.000000e+00> : vector<4x256xf32>
    %80 = tpu.matmul %79, %18, %cst_62 {dimension_numbers = #tpu.dot_dimension_numbers<[1], [0], [0], [1], [0, 0, 1, 1], [], []>} : vector<4x4xbf16>, vector<4x256xbf16>, vector<4x256xf32> -> vector<4x256xf32>
    %81 = arith.addf %80, %21 : vector<4x256xf32>
    %cst_63 = arith.constant 0.000000e+00 : f32
    %82 = vector.broadcast %cst_63 : f32 to vector<4x256xf32>
    %83 = arith.maximumf %81, %82 : vector<4x256xf32>
    %c0_64 = arith.constant 0 : index
    %c0_65 = arith.constant 0 : index
    %84 = vector.load %arg8[%c0_64, %c0_65] : memref<4x4xbf16, #tpu.memory_space<vmem>>, vector<4x4xbf16>
    %85 = arith.truncf %83 : vector<4x256xf32> to vector<4x256xbf16>
    %cst_66 = arith.constant dense<0.000000e+00> : vector<4x256xf32>
    %86 = tpu.matmul %84, %85, %cst_66 {dimension_numbers = #tpu.dot_dimension_numbers<[1], [0], [0], [1], [0, 0, 1, 1], [], []>} : vector<4x4xbf16>, vector<4x256xbf16>, vector<4x256xf32> -> vector<4x256xf32>
    %87 = arith.addf %86, %64 : vector<4x256xf32>
    %c0_67 = arith.constant 0 : index
    %c1_68 = arith.constant 1 : index
    %c0_69 = arith.constant 0 : index
    %c0_70 = arith.constant 0 : index
    %88 = vector.load %arg12[%c0_67, %c1_68, %c0_69, %c0_70] : memref<1x4x4x256xf32, #tpu.memory_space<vmem>>, vector<1x1x4x256xf32>
    %89 = vector.shape_cast %88 : vector<1x1x4x256xf32> to vector<4x256xf32>
    %90 = vector.shape_cast %87 : vector<4x256xf32> to vector<1x1x4x256xf32>
    tpu.vector_store %arg12[%c0_67, %c1_68, %c0_69, %c0_70], %90 {strides = array<i32>} : memref<1x4x4x256xf32, #tpu.memory_space<vmem>>, vector<1x1x4x256xf32>,
    %c1_71 = arith.constant 1 : index
    %c0_72 = arith.constant 0 : index
    %c0_73 = arith.constant 0 : index
    %91 = vector.load %arg14[%c1_71, %c0_72, %c0_73] : memref<2x4x258xf32, #tpu.memory_space<vmem>>, vector<1x4x256xf32>
    %92 = vector.shape_cast %91 : vector<1x4x256xf32> to vector<4x256xf32>
    %c1_74 = arith.constant 1 : index
    %c0_75 = arith.constant 0 : index
    %c2_76 = arith.constant 2 : index
    %93 = vector.load %arg14[%c1_74, %c0_75, %c2_76] : memref<2x4x258xf32, #tpu.memory_space<vmem>>, vector<1x4x256xf32>
    %94 = vector.shape_cast %93 : vector<1x4x256xf32> to vector<4x256xf32>
    %95 = arith.subf %92, %44 : vector<4x256xf32>
    %96 = vector.broadcast %35 : vector<1x256xf32> to vector<4x256xf32>
    %97 = arith.mulf %96, %95 : vector<4x256xf32>
    %98 = arith.addf %44, %97 : vector<4x256xf32>
    %99 = arith.subf %94, %44 : vector<4x256xf32>
    %100 = vector.broadcast %36 : vector<1x256xf32> to vector<4x256xf32>
    %101 = arith.mulf %100, %99 : vector<4x256xf32>
    %102 = arith.addf %44, %101 : vector<4x256xf32>
    %c2_77 = arith.constant 2 : index
    %c0_78 = arith.constant 0 : index
    %c0_79 = arith.constant 0 : index
    %103 = vector.load %arg6[%c2_77, %c0_78, %c0_79] : memref<4x4x4xbf16, #tpu.memory_space<vmem>>, vector<1x4x4xbf16>
    %104 = vector.shape_cast %103 : vector<1x4x4xbf16> to vector<4x4xbf16>
    %cst_80 = arith.constant dense<0.000000e+00> : vector<4x256xf32>
    %105 = tpu.matmul %104, %18, %cst_80 {dimension_numbers = #tpu.dot_dimension_numbers<[1], [0], [0], [1], [0, 0, 1, 1], [], []>} : vector<4x4xbf16>, vector<4x256xbf16>, vector<4x256xf32> -> vector<4x256xf32>
    %106 = arith.addf %105, %21 : vector<4x256xf32>
    %cst_81 = arith.constant 0.000000e+00 : f32
    %107 = vector.broadcast %cst_81 : f32 to vector<4x256xf32>
    %108 = arith.maximumf %106, %107 : vector<4x256xf32>
    %c0_82 = arith.constant 0 : index
    %c0_83 = arith.constant 0 : index
    %109 = vector.load %arg8[%c0_82, %c0_83] : memref<4x4xbf16, #tpu.memory_space<vmem>>, vector<4x4xbf16>
    %110 = arith.truncf %108 : vector<4x256xf32> to vector<4x256xbf16>
    %cst_84 = arith.constant dense<0.000000e+00> : vector<4x256xf32>
    %111 = tpu.matmul %109, %110, %cst_84 {dimension_numbers = #tpu.dot_dimension_numbers<[1], [0], [0], [1], [0, 0, 1, 1], [], []>} : vector<4x4xbf16>, vector<4x256xbf16>, vector<4x256xf32> -> vector<4x256xf32>
    %112 = arith.addf %111, %98 : vector<4x256xf32>
    %c0_85 = arith.constant 0 : index
    %c2_86 = arith.constant 2 : index
    %c0_87 = arith.constant 0 : index
    %c0_88 = arith.constant 0 : index
    %113 = vector.load %arg12[%c0_85, %c2_86, %c0_87, %c0_88] : memref<1x4x4x256xf32, #tpu.memory_space<vmem>>, vector<1x1x4x256xf32>
    %114 = vector.shape_cast %113 : vector<1x1x4x256xf32> to vector<4x256xf32>
    %115 = vector.shape_cast %112 : vector<4x256xf32> to vector<1x1x4x256xf32>
    tpu.vector_store %arg12[%c0_85, %c2_86, %c0_87, %c0_88], %115 {strides = array<i32>} : memref<1x4x4x256xf32, #tpu.memory_space<vmem>>, vector<1x1x4x256xf32>,
    %c3_89 = arith.constant 3 : index
    %c0_90 = arith.constant 0 : index
    %c0_91 = arith.constant 0 : index
    %116 = vector.load %arg6[%c3_89, %c0_90, %c0_91] : memref<4x4x4xbf16, #tpu.memory_space<vmem>>, vector<1x4x4xbf16>
    %117 = vector.shape_cast %116 : vector<1x4x4xbf16> to vector<4x4xbf16>
    %cst_92 = arith.constant dense<0.000000e+00> : vector<4x256xf32>
    %118 = tpu.matmul %117, %18, %cst_92 {dimension_numbers = #tpu.dot_dimension_numbers<[1], [0], [0], [1], [0, 0, 1, 1], [], []>} : vector<4x4xbf16>, vector<4x256xbf16>, vector<4x256xf32> -> vector<4x256xf32>
    %119 = arith.addf %118, %21 : vector<4x256xf32>
    %cst_93 = arith.constant 0.000000e+00 : f32
    %120 = vector.broadcast %cst_93 : f32 to vector<4x256xf32>
    %121 = arith.maximumf %119, %120 : vector<4x256xf32>
    %c0_94 = arith.constant 0 : index
    %c0_95 = arith.constant 0 : index
    %122 = vector.load %arg8[%c0_94, %c0_95] : memref<4x4xbf16, #tpu.memory_space<vmem>>, vector<4x4xbf16>
    %123 = arith.truncf %121 : vector<4x256xf32> to vector<4x256xbf16>
    %cst_96 = arith.constant dense<0.000000e+00> : vector<4x256xf32>
    %124 = tpu.matmul %122, %123, %cst_96 {dimension_numbers = #tpu.dot_dimension_numbers<[1], [0], [0], [1], [0, 0, 1, 1], [], []>} : vector<4x4xbf16>, vector<4x256xbf16>, vector<4x256xf32> -> vector<4x256xf32>
    %125 = arith.addf %124, %102 : vector<4x256xf32>
    %c0_97 = arith.constant 0 : index
    %c3_98 = arith.constant 3 : index
    %c0_99 = arith.constant 0 : index
    %c0_100 = arith.constant 0 : index
    %126 = vector.load %arg12[%c0_97, %c3_98, %c0_99, %c0_100] : memref<1x4x4x256xf32, #tpu.memory_space<vmem>>, vector<1x1x4x256xf32>
    %127 = vector.shape_cast %126 : vector<1x1x4x256xf32> to vector<4x256xf32>
    %128 = vector.shape_cast %125 : vector<4x256xf32> to vector<1x1x4x256xf32>
    tpu.vector_store %arg12[%c0_97, %c3_98, %c0_99, %c0_100], %128 {strides = array<i32>} : memref<1x4x4x256xf32, #tpu.memory_space<vmem>>, vector<1x1x4x256xf32>,
    return
  }
  func.func @transform_0(%arg0: i32) -> (i32, i32, i32) {
    %c0_i32 = arith.constant 0 : i32
    %c0_i32_0 = arith.constant 0 : i32
    %c0_i32_1 = arith.constant 0 : i32
    return %arg0, %c0_i32, %c0_i32_0 : i32, i32, i32
  }
  func.func @transform_1(%arg0: i32) -> (i32, i32) {
    %c0_i32 = arith.constant 0 : i32
    %c0_i32_0 = arith.constant 0 : i32
    %c0_i32_1 = arith.constant 0 : i32
    return %c0_i32, %c0_i32_0 : i32, i32
  }
  func.func @transform_2(%arg0: i32) -> (i32, i32) {
    %c0_i32 = arith.constant 0 : i32
    %c0_i32_0 = arith.constant 0 : i32
    %c0_i32_1 = arith.constant 0 : i32
    return %c0_i32, %c0_i32_0 : i32, i32
  }
  func.func @transform_3(%arg0: i32) -> (i32, i32) {
    %c0_i32 = arith.constant 0 : i32
    %c0_i32_0 = arith.constant 0 : i32
    %c0_i32_1 = arith.constant 0 : i32
    return %c0_i32, %c0_i32_0 : i32, i32
  }
  func.func @transform_4(%arg0: i32) -> (i32, i32) {
    %c0_i32 = arith.constant 0 : i32
    %c0_i32_0 = arith.constant 0 : i32
    %c0_i32_1 = arith.constant 0 : i32
    return %c0_i32, %c0_i32_0 : i32, i32
  }
  func.func @transform_5(%arg0: i32) -> (i32, i32, i32) {
    %c0_i32 = arith.constant 0 : i32
    %c0_i32_0 = arith.constant 0 : i32
    %c0_i32_1 = arith.constant 0 : i32
    %c0_i32_2 = arith.constant 0 : i32
    return %c0_i32, %c0_i32_0, %c0_i32_1 : i32, i32, i32
  }
  func.func @transform_6(%arg0: i32) -> (i32, i32) {
    %c0_i32 = arith.constant 0 : i32
    %c0_i32_0 = arith.constant 0 : i32
    %c0_i32_1 = arith.constant 0 : i32
    return %c0_i32, %c0_i32_0 : i32, i32
  }
  func.func @transform_7(%arg0: i32) -> (i32, i32) {
    %c0_i32 = arith.constant 0 : i32
    %c0_i32_0 = arith.constant 0 : i32
    %c0_i32_1 = arith.constant 0 : i32
    return %c0_i32, %c0_i32_0 : i32, i32
  }
  func.func @transform_8(%arg0: i32) -> (i32, i32) {
    %c0_i32 = arith.constant 0 : i32
    %c0_i32_0 = arith.constant 0 : i32
    %c0_i32_1 = arith.constant 0 : i32
    return %c0_i32, %c0_i32_0 : i32, i32
  }
  func.func @transform_9(%arg0: i32) -> (i32, i32) {
    %c0_i32 = arith.constant 0 : i32
    %c0_i32_0 = arith.constant 0 : i32
    %c0_i32_1 = arith.constant 0 : i32
    return %c0_i32, %c0_i32_0 : i32, i32
  }
  func.func @transform_10(%arg0: i32) -> (i32, i32) {
    %c0_i32 = arith.constant 0 : i32
    %c0_i32_0 = arith.constant 0 : i32
    %c0_i32_1 = arith.constant 0 : i32
    return %c0_i32, %c0_i32_0 : i32, i32
  }
  func.func @transform_11(%arg0: i32) -> (i32, i32, i32, i32) {
    %c0_i32 = arith.constant 0 : i32
    %c0_i32_0 = arith.constant 0 : i32
    %c0_i32_1 = arith.constant 0 : i32
    %c0_i32_2 = arith.constant 0 : i32
    return %arg0, %c0_i32, %c0_i32_0, %c0_i32_1 : i32, i32, i32, i32
  }
}

</mosaic_0001>

<llo_original>
// kernel: apply.1
$region0: #{apply.1}
  #allocation0 [shape = 'u32[]', space=smem, size = 0x4, offset = 0x4, fixed_abs, tag = 'smem constant byte address 0x4 - core index']
  #allocation1 [shape = 'u32[144,128]{1,0:T(1,128)}', space=vmem, size = 0x12000, scoped, tag = 'internal scratch']
  #allocation2 [shape = 'f32[4,288]{1,0:T(4,128)}', space=vmem, size = 0x1800, scoped, tag = 'scratch operand']
  #allocation3 [shape = 'f32[2,4,258]{2,1,0:T(4,128)}', space=vmem, size = 0x3000, scoped, tag = 'scratch operand']
  %s0 = inlined_call_operand.vmem [shape: f32[2,4,256], index: 0, kind: input, shape index: {}]
  %s1 = inlined_call_operand.vmem [shape: f32[4,1], index: 1, kind: input, shape index: {}]
  %s2 = inlined_call_operand.vmem [shape: f32[4,1], index: 2, kind: input, shape index: {}]
  %s3 = inlined_call_operand.vmem [shape: bf16[4,4], index: 3, kind: input, shape index: {}]
  %s4 = inlined_call_operand.vmem [shape: f32[4,1], index: 4, kind: input, shape index: {}]
  %s5 = inlined_call_operand.vmem [shape: bf16[4,4,4], index: 5, kind: input, shape index: {}]
  %s6 = inlined_call_operand.vmem [shape: f32[4,1], index: 6, kind: input, shape index: {}]
  %s7 = inlined_call_operand.vmem [shape: bf16[4,4], index: 7, kind: input, shape index: {}]
  %s8 = inlined_call_operand.vmem [shape: bf16[4,4], index: 8, kind: input, shape index: {}]
  %s9 = inlined_call_operand.vmem [shape: f32[4,256], index: 9, kind: input, shape index: {}]
  %s10 = inlined_call_operand.vmem [shape: f32[4,1], index: 10, kind: input, shape index: {}]
  %s11 = inlined_call_operand.vmem [shape: f32[2,4,4,256], index: 11, kind: output, shape index: {}]
  %s12 = sld [smem:[#allocation0]]
  $region77: #{apply.1} parent=0
    _
  %s14 = ssub.s32 1, %s12
  %s15 = scalar_select 0, %s14, %s12
  loop: start=0, step=1, limit=4
  $region2: #{apply.1} parent=0 // loop_pre_header
    _
  $region3: #{apply.1} parent=0 // loop_header
    %s17 = sphi 0, %s21
    %p18 = scmp.ge.s32.totalorder %s17, 4
    %s27 = sphi 0, %s29
    %s30 = sphi 0, %s27
    %s31 = sphi 0, %s30
    %s47 = sphi 0, %s31
    %s51 = sphi 0, %s51
    %s53 = sphi 0, %s51
    %s54 = sphi 0, %s53
    %s68 = sphi 0, %s54
    %s72 = sphi 0, %s72
    %s74 = sphi 0, %s72
    %s75 = sphi 0, %s74
    %s89 = sphi 0, %s75
    %s93 = sphi 0, %s93
    %s95 = sphi 0, %s93
    %s96 = sphi 0, %s95
    %s110 = sphi 0, %s96
    %s114 = sphi 0, %s114
    %s116 = sphi 0, %s114
    %s117 = sphi 0, %s116
    %s131 = sphi 0, %s117
    %s135 = sphi 0, %s135
    %s137 = sphi 0, %s135
    %s138 = sphi 0, %s137
    %s152 = sphi 0, %s138
    %s156 = sphi 0, %s156
    %s158 = sphi 0, %s156
    %s159 = sphi 0, %s158
    %s173 = sphi 0, %s159
    %s177 = sphi 0, %s177
    %s179 = sphi 0, %s177
    %s180 = sphi 0, %s179
    %s194 = sphi 0, %s180
    %s198 = sphi 0, %s198
    %s200 = sphi 0, %s198
    %s201 = sphi 0, %s200
    %s215 = sphi 0, %s201
    %s219 = sphi 0, %s219
    %s221 = sphi 0, %s219
    %s222 = sphi 0, %s221
    %s236 = sphi 0, %s222
    %s240 = sphi 0, %s240
    %s242 = sphi 0, %s240
    %s243 = sphi 0, %s242
    %s257 = sphi 0, %s243
    %s263 = sphi 0, %s265
    %s266 = sphi 0, %s263
    %s267 = sphi 0, %s266
    %s283 = sphi 0, %s267
  $region4: #{apply.1} parent=0 // loop_header_branch
    %20 = sbr.rel (%p18) target = $region8
  $region5: #{apply.1} parent=0 // loop_body
    %s22 = ssub.s32 %s17, 1
    %s23 = ssub.s32 %s17, 2
    %s24 = sadd.s32 %s17, 1
    %s25 = ssub.s32 %s17, %s24
    %p26 = scmp.eq.s32.totalorder %s25, 0
    %s28 = sadd.s32 %s27, 1
    %s29 = scalar_select %p26, %s27, %s28
    %p32 = pneg %p26
    %p33 = scmp.eq.s32.totalorder %s17, 1
    %p34 = por %p32, %p33
    %p35 = scmp.ne.s32.totalorder %s27, %s30
    %p36 = scmp.eq.s32.totalorder %s17, 0
    %p37 = por %p35, %p36
    %p38 = scmp.ne.s32.totalorder %s27, %s30
    %p39 = scmp.eq.s32.totalorder %s22, 1
    %p40 = por %p38, %p39
    %p41 = scmp.ne.s32.totalorder %s30, %s31
    %p42 = scmp.eq.s32.totalorder %s22, 0
    %p43 = por %p41, %p42
    %p44 = scmp.ne.s32.totalorder %s30, %s31
    %p45 = scmp.eq.s32.totalorder %s23, 1
    %p46 = por %p44, %p45
    %p48 = scmp.ne.s32.totalorder %s31, %s47
    %p49 = scmp.eq.s32.totalorder %s23, 0
    %p50 = por %p48, %p49
    %s52 = sadd.s32 %s51, 1
    %p55 = scmp.eq.s32.totalorder %s17, 1
    %p56 = scmp.ne.s32.totalorder %s51, %s53
    %p57 = scmp.eq.s32.totalorder %s17, 0
    %p58 = por %p56, %p57
    %p59 = scmp.ne.s32.totalorder %s51, %s53
    %p60 = scmp.eq.s32.totalorder %s22, 1
    %p61 = por %p59, %p60
    %p62 = scmp.ne.s32.totalorder %s53, %s54
    %p63 = scmp.eq.s32.totalorder %s22, 0
    %p64 = por %p62, %p63
    %p65 = scmp.ne.s32.totalorder %s53, %s54
    %p66 = scmp.eq.s32.totalorder %s23, 1
    %p67 = por %p65, %p66
    %p69 = scmp.ne.s32.totalorder %s54, %s68
    %p70 = scmp.eq.s32.totalorder %s23, 0
    %p71 = por %p69, %p70
    %s73 = sadd.s32 %s72, 1
    %p76 = scmp.eq.s32.totalorder %s17, 1
    %p77 = scmp.ne.s32.totalorder %s72, %s74
    %p78 = scmp.eq.s32.totalorder %s17, 0
    %p79 = por %p77, %p78
    %p80 = scmp.ne.s32.totalorder %s72, %s74
    %p81 = scmp.eq.s32.totalorder %s22, 1
    %p82 = por %p80, %p81
    %p83 = scmp.ne.s32.totalorder %s74, %s75
    %p84 = scmp.eq.s32.totalorder %s22, 0
    %p85 = por %p83, %p84
    %p86 = scmp.ne.s32.totalorder %s74, %s75
    %p87 = scmp.eq.s32.totalorder %s23, 1
    %p88 = por %p86, %p87
    %p90 = scmp.ne.s32.totalorder %s75, %s89
    %p91 = scmp.eq.s32.totalorder %s23, 0
    %p92 = por %p90, %p91
    %s94 = sadd.s32 %s93, 1
    %p97 = scmp.eq.s32.totalorder %s17, 1
    %p98 = scmp.ne.s32.totalorder %s93, %s95
    %p99 = scmp.eq.s32.totalorder %s17, 0
    %p100 = por %p98, %p99
    %p101 = scmp.ne.s32.totalorder %s93, %s95
    %p102 = scmp.eq.s32.totalorder %s22, 1
    %p103 = por %p101, %p102
    %p104 = scmp.ne.s32.totalorder %s95, %s96
    %p105 = scmp.eq.s32.totalorder %s22, 0
    %p106 = por %p104, %p105
    %p107 = scmp.ne.s32.totalorder %s95, %s96
    %p108 = scmp.eq.s32.totalorder %s23, 1
    %p109 = por %p107, %p108
    %p111 = scmp.ne.s32.totalorder %s96, %s110
    %p112 = scmp.eq.s32.totalorder %s23, 0
    %p113 = por %p111, %p112
    %s115 = sadd.s32 %s114, 1
    %p118 = scmp.eq.s32.totalorder %s17, 1
    %p119 = scmp.ne.s32.totalorder %s114, %s116
    %p120 = scmp.eq.s32.totalorder %s17, 0
    %p121 = por %p119, %p120
    %p122 = scmp.ne.s32.totalorder %s114, %s116
    %p123 = scmp.eq.s32.totalorder %s22, 1
    %p124 = por %p122, %p123
    %p125 = scmp.ne.s32.totalorder %s116, %s117
    %p126 = scmp.eq.s32.totalorder %s22, 0
    %p127 = por %p125, %p126
    %p128 = scmp.ne.s32.totalorder %s116, %s117
    %p129 = scmp.eq.s32.totalorder %s23, 1
    %p130 = por %p128, %p129
    %p132 = scmp.ne.s32.totalorder %s117, %s131
    %p133 = scmp.eq.s32.totalorder %s23, 0
    %p134 = por %p132, %p133
    %s136 = sadd.s32 %s135, 1
    %p139 = scmp.eq.s32.totalorder %s17, 1
    %p140 = scmp.ne.s32.totalorder %s135, %s137
    %p141 = scmp.eq.s32.totalorder %s17, 0
    %p142 = por %p140, %p141
    %p143 = scmp.ne.s32.totalorder %s135, %s137
    %p144 = scmp.eq.s32.totalorder %s22, 1
    %p145 = por %p143, %p144
    %p146 = scmp.ne.s32.totalorder %s137, %s138
    %p147 = scmp.eq.s32.totalorder %s22, 0
    %p148 = por %p146, %p147
    %p149 = scmp.ne.s32.totalorder %s137, %s138
    %p150 = scmp.eq.s32.totalorder %s23, 1
    %p151 = por %p149, %p150
    %p153 = scmp.ne.s32.totalorder %s138, %s152
    %p154 = scmp.eq.s32.totalorder %s23, 0
    %p155 = por %p153, %p154
    %s157 = sadd.s32 %s156, 1
    %p160 = scmp.eq.s32.totalorder %s17, 1
    %p161 = scmp.ne.s32.totalorder %s156, %s158
    %p162 = scmp.eq.s32.totalorder %s17, 0
    %p163 = por %p161, %p162
    %p164 = scmp.ne.s32.totalorder %s156, %s158
    %p165 = scmp.eq.s32.totalorder %s22, 1
    %p166 = por %p164, %p165
    %p167 = scmp.ne.s32.totalorder %s158, %s159
    %p168 = scmp.eq.s32.totalorder %s22, 0
    %p169 = por %p167, %p168
    %p170 = scmp.ne.s32.totalorder %s158, %s159
    %p171 = scmp.eq.s32.totalorder %s23, 1
    %p172 = por %p170, %p171
    %p174 = scmp.ne.s32.totalorder %s159, %s173
    %p175 = scmp.eq.s32.totalorder %s23, 0
    %p176 = por %p174, %p175
    %s178 = sadd.s32 %s177, 1
    %p181 = scmp.eq.s32.totalorder %s17, 1
    %p182 = scmp.ne.s32.totalorder %s177, %s179
    %p183 = scmp.eq.s32.totalorder %s17, 0
    %p184 = por %p182, %p183
    %p185 = scmp.ne.s32.totalorder %s177, %s179
    %p186 = scmp.eq.s32.totalorder %s22, 1
    %p187 = por %p185, %p186
    %p188 = scmp.ne.s32.totalorder %s179, %s180
    %p189 = scmp.eq.s32.totalorder %s22, 0
    %p190 = por %p188, %p189
    %p191 = scmp.ne.s32.totalorder %s179, %s180
    %p192 = scmp.eq.s32.totalorder %s23, 1
    %p193 = por %p191, %p192
    %p195 = scmp.ne.s32.totalorder %s180, %s194
    %p196 = scmp.eq.s32.totalorder %s23, 0
    %p197 = por %p195, %p196
    %s199 = sadd.s32 %s198, 1
    %p202 = scmp.eq.s32.totalorder %s17, 1
    %p203 = scmp.ne.s32.totalorder %s198, %s200
    %p204 = scmp.eq.s32.totalorder %s17, 0
    %p205 = por %p203, %p204
    %p206 = scmp.ne.s32.totalorder %s198, %s200
    %p207 = scmp.eq.s32.totalorder %s22, 1
    %p208 = por %p206, %p207
    %p209 = scmp.ne.s32.totalorder %s200, %s201
    %p210 = scmp.eq.s32.totalorder %s22, 0
    %p211 = por %p209, %p210
    %p212 = scmp.ne.s32.totalorder %s200, %s201
    %p213 = scmp.eq.s32.totalorder %s23, 1
    %p214 = por %p212, %p213
    %p216 = scmp.ne.s32.totalorder %s201, %s215
    %p217 = scmp.eq.s32.totalorder %s23, 0
    %p218 = por %p216, %p217
    %s220 = sadd.s32 %s219, 1
    %p223 = scmp.eq.s32.totalorder %s17, 1
    %p224 = scmp.ne.s32.totalorder %s219, %s221
    %p225 = scmp.eq.s32.totalorder %s17, 0
    %p226 = por %p224, %p225
    %p227 = scmp.ne.s32.totalorder %s219, %s221
    %p228 = scmp.eq.s32.totalorder %s22, 1
    %p229 = por %p227, %p228
    %p230 = scmp.ne.s32.totalorder %s221, %s222
    %p231 = scmp.eq.s32.totalorder %s22, 0
    %p232 = por %p230, %p231
    %p233 = scmp.ne.s32.totalorder %s221, %s222
    %p234 = scmp.eq.s32.totalorder %s23, 1
    %p235 = por %p233, %p234
    %p237 = scmp.ne.s32.totalorder %s222, %s236
    %p238 = scmp.eq.s32.totalorder %s23, 0
    %p239 = por %p237, %p238
    %s241 = sadd.s32 %s240, 1
    %p244 = scmp.eq.s32.totalorder %s17, 1
    %p245 = scmp.ne.s32.totalorder %s240, %s242
    %p246 = scmp.eq.s32.totalorder %s17, 0
    %p247 = por %p245, %p246
    %p248 = scmp.ne.s32.totalorder %s240, %s242
    %p249 = scmp.eq.s32.totalorder %s22, 1
    %p250 = por %p248, %p249
    %p251 = scmp.ne.s32.totalorder %s242, %s243
    %p252 = scmp.eq.s32.totalorder %s22, 0
    %p253 = por %p251, %p252
    %p254 = scmp.ne.s32.totalorder %s242, %s243
    %p255 = scmp.eq.s32.totalorder %s23, 1
    %p256 = por %p254, %p255
    %p258 = scmp.ne.s32.totalorder %s243, %s257
    %p259 = scmp.eq.s32.totalorder %s23, 0
    %p260 = por %p258, %p259
    %s261 = ssub.s32 %s17, %s24
    %p262 = scmp.eq.s32.totalorder %s261, 0
    %s264 = sadd.s32 %s263, 1
    %s265 = scalar_select %p262, %s263, %s264
    %p268 = pneg %p262
    %p269 = scmp.eq.s32.totalorder %s17, 1
    %p270 = por %p268, %p269
    %p271 = scmp.ne.s32.totalorder %s263, %s266
    %p272 = scmp.eq.s32.totalorder %s17, 0
    %p273 = por %p271, %p272
    %p274 = scmp.ne.s32.totalorder %s263, %s266
    %p275 = scmp.eq.s32.totalorder %s22, 1
    %p276 = por %p274, %p275
    %p277 = scmp.ne.s32.totalorder %s266, %s267
    %p278 = scmp.eq.s32.totalorder %s22, 0
    %p279 = por %p277, %p278
    %p280 = scmp.ne.s32.totalorder %s266, %s267
    %p281 = scmp.eq.s32.totalorder %s23, 1
    %p282 = por %p280, %p281
    %p284 = scmp.ne.s32.totalorder %s267, %s283
    %p285 = scmp.eq.s32.totalorder %s23, 0
    %p286 = por %p284, %p285
    %p287 = scmp.le.s32.totalorder 1, %s17
    %p288 = scmp.lt.s32.totalorder %s17, 3
    %p289 = pnand %p287, %p288
    %p290 = pneg %p289
    // Predicated region
    $region9: #{apply.1} parent=5 // pred_check
      _
    $region10: #{apply.1} parent=5 // pred_check_branch
      %292 = sbr.rel (%p289) target = $region12
    $region11: #{apply.1} parent=5 // pred_region
      %s293 = ssub.s32 %s17, 1
      // Predicated region
      $region13: #{apply.1} parent=11 // pred_check
        %p294 = pneg %p64
      $region14: #{apply.1} parent=11 // pred_check_branch
        %296 = sbr.rel (%p294) target = $region16
      $region15: #{apply.1} parent=11 // pred_region
        _
      $region16: #{apply.1} parent=11 // pred_fallthru
        _
      // Predicated region
      $region17: #{apply.1} parent=11 // pred_check
        %p297 = pneg %p85
      $region18: #{apply.1} parent=11 // pred_check_branch
        %299 = sbr.rel (%p297) target = $region20
      $region19: #{apply.1} parent=11 // pred_region
        _
      $region20: #{apply.1} parent=11 // pred_fallthru
        _
      // Predicated region
      $region21: #{apply.1} parent=11 // pred_check
        %p300 = pneg %p106
      $region22: #{apply.1} parent=11 // pred_check_branch
        %302 = sbr.rel (%p300) target = $region24
      $region23: #{apply.1} parent=11 // pred_region
        _
      $region24: #{apply.1} parent=11 // pred_fallthru
        _
      // Predicated region
      $region25: #{apply.1} parent=11 // pred_check
        %p303 = pneg %p127
      $region26: #{apply.1} parent=11 // pred_check_branch
        %305 = sbr.rel (%p303) target = $region28
      $region27: #{apply.1} parent=11 // pred_region
        _
      $region28: #{apply.1} parent=11 // pred_fallthru
        _
      // Predicated region
      $region29: #{apply.1} parent=11 // pred_check
        %p306 = pneg %p148
      $region30: #{apply.1} parent=11 // pred_check_branch
        %308 = sbr.rel (%p306) target = $region32
      $region31: #{apply.1} parent=11 // pred_region
        _
      $region32: #{apply.1} parent=11 // pred_fallthru
        _
      // Predicated region
      $region33: #{apply.1} parent=11 // pred_check
        %p309 = pneg %p169
      $region34: #{apply.1} parent=11 // pred_check_branch
        %311 = sbr.rel (%p309) target = $region36
      $region35: #{apply.1} parent=11 // pred_region
        _
      $region36: #{apply.1} parent=11 // pred_fallthru
        _
      // Predicated region
      $region37: #{apply.1} parent=11 // pred_check
        %p312 = pneg %p190
      $region38: #{apply.1} parent=11 // pred_check_branch
        %314 = sbr.rel (%p312) target = $region40
      $region39: #{apply.1} parent=11 // pred_region
        _
      $region40: #{apply.1} parent=11 // pred_fallthru
        _
      // Predicated region
      $region41: #{apply.1} parent=11 // pred_check
        %p315 = pneg %p211
      $region42: #{apply.1} parent=11 // pred_check_branch
        %317 = sbr.rel (%p315) target = $region44
      $region43: #{apply.1} parent=11 // pred_region
        _
      $region44: #{apply.1} parent=11 // pred_fallthru
        _
      // Predicated region
      $region45: #{apply.1} parent=11 // pred_check
        %p318 = pneg %p232
      $region46: #{apply.1} parent=11 // pred_check_branch
        %320 = sbr.rel (%p318) target = $region48
      $region47: #{apply.1} parent=11 // pred_region
        _
      $region48: #{apply.1} parent=11 // pred_fallthru
        _
      // Predicated region
      $region49: #{apply.1} parent=11 // pred_check
        %p321 = pneg %p253
      $region50: #{apply.1} parent=11 // pred_check_branch
        %323 = sbr.rel (%p321) target = $region52
      $region51: #{apply.1} parent=11 // pred_region
        _
      $region52: #{apply.1} parent=11 // pred_fallthru
        _
    $region12: #{apply.1} parent=5 // pred_fallthru
      _
    %p324 = scmp.lt.s32.totalorder %s17, 2
    // Predicated region
    $region53: #{apply.1} parent=5 // pred_check
      %p325 = pneg %p324
    $region54: #{apply.1} parent=5 // pred_check_branch
      %327 = sbr.rel (%p325) target = $region56
    $region55: #{apply.1} parent=5 // pred_region
      // Predicated region
      $region57: #{apply.1} parent=55 // pred_check
        %p328 = pneg %p37
      $region58: #{apply.1} parent=55 // pred_check_branch
        %330 = sbr.rel (%p328) target = $region60
      $region59: #{apply.1} parent=55 // pred_region
        %p331 = scmp.lt.s32.totalorder %s17, 1
        %s332 = scalar_select %p331, %s17, 1
        %s333 = smul.addr %s332, 2
        %s334 = smul.addr %s333, 4
        %s335 = scalar_lea.vmem %s0, %s334
      $region60: #{apply.1} parent=55 // pred_fallthru
        _
    $region56: #{apply.1} parent=5 // pred_fallthru
      _
    %p336 = scmp.le.s32.totalorder 1, %s17
    %p337 = scmp.lt.s32.totalorder %s17, 3
    %p338 = pnand %p336, %p337
    %p339 = pneg %p338
    // Predicated region
    $region61: #{apply.1} parent=5 // pred_check
      _
    $region62: #{apply.1} parent=5 // pred_check_branch
      %341 = sbr.rel (%p338) target = $region64
    $region63: #{apply.1} parent=5 // pred_region
      %s342 = ssub.s32 %s17, 1
      %p343 = scmp.lt.s32.totalorder %s22, 1
      %s344 = scalar_select %p343, %s22, 1
      %s345 = smul.addr %s344, 2
      %s346 = smul.addr %s345, 4
      %s347 = scalar_lea.vmem %s0, %s346
      %p348 = pneg %p43
      %p349 = pneg %p40
      %p350 = pneg %p64
      %p351 = pneg %p61
      %p352 = pneg %p85
      %p353 = pneg %p82
      %p354 = pneg %p106
      %p355 = pneg %p103
      %p356 = pneg %p127
      %p357 = pneg %p124
      %p358 = pneg %p148
      %p359 = pneg %p145
      %p360 = pneg %p169
      %p361 = pneg %p166
      %p362 = pneg %p190
      %p363 = pneg %p187
      %p364 = pneg %p211
      %p365 = pneg %p208
      %p366 = pneg %p232
      %p367 = pneg %p229
      %p368 = pneg %p253
      %p369 = pneg %p250
      %p370 = pneg %p279
      %p371 = pneg %p276
      %p372 = scmp.lt.s32.totalorder %s22, 1
      %s373 = scalar_select %p372, %s22, 1
      %s374 = smul.addr %s373, 8
      %s375 = smul.addr %s374, 4
      %s376 = scalar_lea.vmem %s11, %s375
      %p377 = scmp.lt.s32.totalorder %s22, 1
      %s378 = scalar_select %p377, %s22, 1
      %s379 = smul.addr %s378, 2
      %s380 = smul.addr %s379, 4
      %s381 = scalar_lea.vmem %s0, %s380
      %p382 = scmp.lt.s32.totalorder %s22, 1
      %s383 = scalar_select %p382, %s22, 1
      %s384 = smul.addr %s383, 8
      %s385 = smul.addr %s384, 4
      %s386 = scalar_lea.vmem %s11, %s385
      %v388 = vld [vmem:[%s381] sm:$0xff]
      %v389 = vld [vmem:[%s1] sm:$0xf]
      %391 = vset.pattern.permute.xlu0 0
      %392 = vperm.xlu0 %391, %v389
      %v393 = vpop.permute.xlu0 %392
      %v395 = vunpack.c.l.s4 839922192
      %v396 = vunpack.c.0.s8 %v395
      %v397 = vlaneseq
      %v398 = vshrl.u32 %v397, 7
      %v399 = vsub.s32 %v396, %v398
      %v400 = vrot.slane %v393, %v399
      %v402 = vmul.f32 %v388, %v400
      %v403 = vld [vmem:[%s2] sm:$0xf]
      %405 = vset.pattern.permute.xlu0 0
      %406 = vperm.xlu0 %405, %v403
      %v407 = vpop.permute.xlu0 %406
      %v409 = vunpack.c.l.s4 839922192
      %v410 = vunpack.c.0.s8 %v409
      %v411 = vlaneseq
      %v412 = vshrl.u32 %v411, 7
      %v413 = vsub.s32 %v410, %v412
      %v414 = vrot.slane %v407, %v413
      %v416 = vadd.f32 %v402, %v414
      %v417 = vmax.f32 %v416, 0.0
      %v418 = vld [vmem:[%s3] sm:$0x3]
      %v420 = vcombine.high %v417, %v417
      %v422 = vpack.c.bf16 %v417, %v417
      %v423 = vpack.c.bf16 %v420, %v420
      %v424 = vld [vmem:[%s4] sm:$0xf]
      %426 = vset.pattern.permute.xlu0 0
      %427 = vperm.xlu0 %426, %v424
      %v428 = vpop.permute.xlu0 %427
      %vm430 = vcmask 31744
      %v432 = vsel %vm430, %v418, 0
      %vm434 = vcmask 1041408
      %v436 = vsel %vm434, %v422, 0
      %v439 = vsel %vm434, %v423, 0
      %441 = vmatprep.subr.bf16.mxu0 0
      %442 = vmatpush1.bf16.msra.mxu0 0
      %443 = vmatprep.subr.bf16.mxu0 0
      %444 = vmatpush1.bf16.msra.mxu0 0
      %445 = vmatprep.subr.bf16.mxu0 0
      %446 = vmatpush1.bf16.msra.mxu0 0
      %447 = vmatprep.subr.bf16.mxu0 0
      %448 = vmatpush1.bf16.msra.mxu0 0
      %449 = vmatprep.subr.bf16.mxu0 0
      %450 = vmatpush1.bf16.msra.mxu0 0
      %451 = vmatprep.subr.bf16.mxu0 0
      %452 = vmatpush1.bf16.msra.mxu0 0
      %453 = vmatprep.subr.bf16.mxu0 0
      %454 = vmatpush1.bf16.msra.mxu0 0
      %455 = vmatprep.subr.bf16.mxu0 %v439
      %456 = vmatpush1.bf16.msra.mxu0 %v436
      %457 = vmatprep.subr.bf16.mxu0 0
      %458 = vmatpush2.bf16.msra.mxu0 0
      %459 = vmatprep.subr.bf16.mxu0 0
      %460 = vmatpush2.bf16.msra.mxu0 0
      %461 = vmatprep.subr.bf16.mxu0 0
      %462 = vmatpush2.bf16.msra.mxu0 0
      %463 = vmatprep.subr.bf16.mxu0 0
      %464 = vmatpush2.bf16.msra.mxu0 0
      %465 = vmatprep.subr.bf16.mxu0 0
      %466 = vmatpush2.bf16.msra.mxu0 0
      %467 = vmatprep.subr.bf16.mxu0 0
      %468 = vmatpush2.bf16.msra.mxu0 0
      %469 = vmatprep.subr.bf16.mxu0 0
      %470 = vmatpush2.bf16.msra.mxu0 0
      %471 = vmatprep.subr.bf16.mxu0 0
      %472 = vmatpush2.bf16.msra.mxu0 0
      %473 = vmatprep.mubr.bf16.mxu0 0
      %474 = vmatmul.mubr.bf16.gmra.mxu0 %v432
      %v475 = vpop.f32.mrf.mxu0
      %v476 = vadd.f32 %v428, %v475
      %v477 = vpop.f32.mrf.mxu0
      %v478 = vadd.f32 %v428, %v477
      %v479 = vpop.f32.mrf.mxu0
      %v480 = vpop.f32.mrf.mxu0
      %481 = vdwg.mxu0
      %v482 = vmax.f32 %v476, 0.0
      %v483 = vmax.f32 %v478, 0.0
      %v484 = vpack.c.bf16 %v482, %v482
      %v485 = vpack.c.bf16 %v483, %v483
      %v486 = vld [vmem:[%s6] sm:$0xf]
      %488 = vset.pattern.permute.xlu0 0
      %489 = vperm.xlu0 %488, %v486
      %v490 = vpop.permute.xlu0 %489
      %v492 = vld [vmem:[%s8] sm:$0x3]
      %v494 = vcombine.high %v388, %v388
      %v496 = vpack.c.bf16 %v388, %v388
      %v497 = vpack.c.bf16 %v494, %v494
      %v498 = vld [vmem:[%s10] sm:$0xf]
      %500 = vset.pattern.permute.xlu0 0
      %501 = vperm.xlu0 %500, %v498
      %v502 = vpop.permute.xlu0 %501
      %v505 = vsel %vm430, %v492, 0
      %v508 = vsel %vm434, %v496, 0
      %v511 = vsel %vm434, %v497, 0
      %513 = vmatprep.subr.bf16.mxu0 0
      %514 = vmatpush1.bf16.msra.mxu0 0
      %515 = vmatprep.subr.bf16.mxu0 0
      %516 = vmatpush1.bf16.msra.mxu0 0
      %517 = vmatprep.subr.bf16.mxu0 0
      %518 = vmatpush1.bf16.msra.mxu0 0
      %519 = vmatprep.subr.bf16.mxu0 0
      %520 = vmatpush1.bf16.msra.mxu0 0
      %521 = vmatprep.subr.bf16.mxu0 0
      %522 = vmatpush1.bf16.msra.mxu0 0
      %523 = vmatprep.subr.bf16.mxu0 0
      %524 = vmatpush1.bf16.msra.mxu0 0
      %525 = vmatprep.subr.bf16.mxu0 0
      %526 = vmatpush1.bf16.msra.mxu0 0
      %527 = vmatprep.subr.bf16.mxu0 %v511
      %528 = vmatpush1.bf16.msra.mxu0 %v508
      %529 = vmatprep.subr.bf16.mxu0 0
      %530 = vmatpush2.bf16.msra.mxu0 0
      %531 = vmatprep.subr.bf16.mxu0 0
      %532 = vmatpush2.bf16.msra.mxu0 0
      %533 = vmatprep.subr.bf16.mxu0 0
      %534 = vmatpush2.bf16.msra.mxu0 0
      %535 = vmatprep.subr.bf16.mxu0 0
      %536 = vmatpush2.bf16.msra.mxu0 0
      %537 = vmatprep.subr.bf16.mxu0 0
      %538 = vmatpush2.bf16.msra.mxu0 0
      %539 = vmatprep.subr.bf16.mxu0 0
      %540 = vmatpush2.bf16.msra.mxu0 0
      %541 = vmatprep.subr.bf16.mxu0 0
      %542 = vmatpush2.bf16.msra.mxu0 0
      %543 = vmatprep.subr.bf16.mxu0 0
      %544 = vmatpush2.bf16.msra.mxu0 0
      %545 = vmatprep.mubr.bf16.mxu0 0
      %546 = vmatmul.mubr.bf16.gmra.mxu0 %v505
      %v547 = vpop.f32.mrf.mxu0
      %v548 = vadd.f32 %v502, %v547
      %v549 = vpop.f32.mrf.mxu0
      %v550 = vadd.f32 %v502, %v549
      %v551 = vpop.f32.mrf.mxu0
      %v552 = vpop.f32.mrf.mxu0
      %553 = vdwg.mxu0
      %554 = vst [vmem:[#allocation2] sm:$0xff] 0.0
      %vm555 = vcmask 257024
      %556 = vst.msk [vmem:[#allocation2 + $0x8] sm:$0xf] %vm555, 0.0
      %v559 = vcombine.low %v548, %v550
      %560 = vrot.lane.b32.xlu0 %v559, 16
      %v561 = vpop.permute.xlu0 %560
      %v562 = vrot.slane %v561, 4
      %vm563 = vcmask 130048
      %v564 = vsel %vm563, %v562, %v561
      %vm567 = vcmask 1043584
      %vm568 = vcmask 1047556
      %vm569 = vmor %vm568, %vm567
      %570 = vst.msk [vmem:[#allocation2] sm:$0xff] %vm569, %v564
      %vm571 = vcmask 125952
      %572 = vst.msk [vmem:[#allocation2 + $0x8] sm:$0xf] %vm571, %v562
      %v573 = vld [vmem:[#allocation2] sm:$0xff]
      %v574 = vld [vmem:[#allocation2 + $0x8] sm:$0xf]
      %v575 = vld [vmem:[%s9] ss:$4 sm:$0x3]
      %s576 = scalar_lea.vmem %s9, 1
      %v577 = vld [vmem:[%s576] ss:$4 sm:$0x3]
      %s578 = scalar_lea.vmem %s9, 2
      %v579 = vld [vmem:[%s578] ss:$4 sm:$0x3]
      %s580 = scalar_lea.vmem %s9, 3
      %v581 = vld [vmem:[%s580] ss:$4 sm:$0x3]
      %v583 = vsub.f32 %v573, %v559
      %v585 = vlaneseq
      %v586 = vshrl.u32 %v585, 7
      %v587 = vsub.s32 0, %v586
      %v588 = vrot.slane %v575, %v587
      %v589 = vlaneseq
      %v590 = vshrl.u32 %v589, 7
      %v591 = vsub.s32 1, %v590
      %v592 = vrot.slane %v575, %v591
      %v596 = vcombine.high %v583, %v583
      %v598 = vmul.f32 %v588, %v583
      %v599 = vmul.f32 %v592, %v596
      %v600 = vadd.f32 %v548, %v598
      %v601 = vadd.f32 %v550, %v599
      %602 = vrot.lane.b32.xlu0 %v559, 32
      %v603 = vpop.permute.xlu0 %602
      %v604 = vrot.slane %v603, 4
      %vm605 = vcmask 261120
      %v606 = vsel %vm605, %v604, %v603
      %v609 = vsub.f32 %v573, %v606
      %v610 = vsub.f32 %v574, %v604
      %v612 = vlaneseq
      %v613 = vshrl.u32 %v612, 7
      %v614 = vsub.s32 0, %v613
      %v615 = vrot.slane %v577, %v614
      %v616 = vlaneseq
      %v617 = vshrl.u32 %v616, 7
      %v618 = vsub.s32 1, %v617
      %v619 = vrot.slane %v577, %v618
      %v624 = vcombine.high %v609, %v609
      %625 = vrot.lane.b32.xlu0 %v609, 96
      %v626 = vpop.permute.xlu0 %625
      %627 = vrot.lane.b32.xlu0 %v624, 96
      %v628 = vpop.permute.xlu0 %627
      %629 = vrot.lane.b32.xlu0 %v610, 96
      %v630 = vpop.permute.xlu0 %629
      %vm631 = vcmask 785408
      %v632 = vsel %vm631, %v626, %v628
      %v633 = vsel %vm631, %v628, %v630
      %v636 = vmul.f32 %v615, %v632
      %v637 = vmul.f32 %v619, %v633
      %v638 = vadd.f32 %v548, %v636
      %v639 = vadd.f32 %v550, %v637
      %640 = vst [vmem:[#allocation3] sm:$0xff] 0.0
      %vm641 = vcmask 11264
      %642 = vst.msk [vmem:[#allocation3 + $0x8] sm:$0xf] %vm641, 0.0
      %643 = vst [vmem:[#allocation3 + $0xc] sm:$0xff] 0.0
      %644 = vst.msk [vmem:[#allocation3 + $0x14] sm:$0xf] %vm641, 0.0
      %v647 = vcombine.low %v600, %v601
      %648 = vrot.lane.b32.xlu0 %v647, 1
      %v649 = vpop.permute.xlu0 %648
      %v650 = vrot.slane %v649, 4
      %vm651 = vcmask 7168
      %v652 = vsel %vm651, %v650, %v649
      %vm655 = vcmask 1043464
      %vm656 = vmor %vm568, %vm655
      %657 = vst.msk [vmem:[#allocation3] sm:$0xff] %vm656, %v652
      %vm658 = vcmask 3072
      %659 = vst.msk [vmem:[#allocation3 + $0x8] sm:$0xf] %vm658, %v650
      %v662 = vcombine.low %v638, %v639
      %663 = vrot.lane.b32.xlu0 %v662, 1
      %v664 = vpop.permute.xlu0 %663
      %v665 = vrot.slane %v664, 4
      %v666 = vsel %vm651, %v665, %v664
      %s669 = scalar_lea.vmem [#allocation3], 12
      %670 = vst.msk [vmem:[%s669] sm:$0xff] %vm656, %v666
      %671 = vst.msk [vmem:[%s669 + $0x8] sm:$0xf] %vm658, %v665
      %v672 = vld [vmem:[#allocation3] sm:$0xff]
      %v673 = vld [vmem:[#allocation3 + $0x8] sm:$0xf]
      %v675 = vsub.f32 %v672, %v647
      %v677 = vlaneseq
      %v678 = vshrl.u32 %v677, 7
      %v679 = vsub.s32 0, %v678
      %v680 = vrot.slane %v579, %v679
      %v681 = vlaneseq
      %v682 = vshrl.u32 %v681, 7
      %v683 = vsub.s32 1, %v682
      %v684 = vrot.slane %v579, %v683
      %v688 = vcombine.high %v675, %v675
      %v690 = vmul.f32 %v680, %v675
      %v691 = vmul.f32 %v684, %v688
      %v692 = vadd.f32 %v600, %v690
      %v693 = vadd.f32 %v601, %v691
      %694 = vrot.lane.b32.xlu0 %v647, 2
      %v695 = vpop.permute.xlu0 %694
      %v696 = vrot.slane %v695, 4
      %vm697 = vcmask 15360
      %v698 = vsel %vm697, %v696, %v695
      %v701 = vsub.f32 %v672, %v698
      %v702 = vsub.f32 %v673, %v696
      %v704 = vlaneseq
      %v705 = vshrl.u32 %v704, 7
      %v706 = vsub.s32 0, %v705
      %v707 = vrot.slane %v581, %v706
      %v708 = vlaneseq
      %v709 = vshrl.u32 %v708, 7
      %v710 = vsub.s32 1, %v709
      %v711 = vrot.slane %v581, %v710
      %v716 = vcombine.high %v701, %v701
      %717 = vrot.lane.b32.xlu0 %v701, 126
      %v718 = vpop.permute.xlu0 %717
      %719 = vrot.lane.b32.xlu0 %v716, 126
      %v720 = vpop.permute.xlu0 %719
      %721 = vrot.lane.b32.xlu0 %v702, 126
      %v722 = vpop.permute.xlu0 %721
      %vm723 = vcmask 1031168
      %v724 = vsel %vm723, %v718, %v720
      %v725 = vsel %vm723, %v720, %v722
      %v728 = vmul.f32 %v707, %v724
      %v729 = vmul.f32 %v711, %v725
      %v730 = vadd.f32 %v600, %v728
      %v731 = vadd.f32 %v601, %v729
      %v732 = vld [vmem:[%s5] sm:$0x3]
      %v734 = vsel %vm430, %v732, 0
      %v737 = vsel %vm434, %v484, 0
      %v740 = vsel %vm434, %v485, 0
      %742 = vmatprep.subr.bf16.mxu0 0
      %743 = vmatpush1.bf16.msra.mxu0 0
      %744 = vmatprep.subr.bf16.mxu0 0
      %745 = vmatpush1.bf16.msra.mxu0 0
      %746 = vmatprep.subr.bf16.mxu0 0
      %747 = vmatpush1.bf16.msra.mxu0 0
      %748 = vmatprep.subr.bf16.mxu0 0
      %749 = vmatpush1.bf16.msra.mxu0 0
      %750 = vmatprep.subr.bf16.mxu0 0
      %751 = vmatpush1.bf16.msra.mxu0 0
      %752 = vmatprep.subr.bf16.mxu0 0
      %753 = vmatpush1.bf16.msra.mxu0 0
      %754 = vmatprep.subr.bf16.mxu0 0
      %755 = vmatpush1.bf16.msra.mxu0 0
      %756 = vmatprep.subr.bf16.mxu0 %v740
      %757 = vmatpush1.bf16.msra.mxu0 %v737
      %758 = vmatprep.subr.bf16.mxu0 0
      %759 = vmatpush2.bf16.msra.mxu0 0
      %760 = vmatprep.subr.bf16.mxu0 0
      %761 = vmatpush2.bf16.msra.mxu0 0
      %762 = vmatprep.subr.bf16.mxu0 0
      %763 = vmatpush2.bf16.msra.mxu0 0
      %764 = vmatprep.subr.bf16.mxu0 0
      %765 = vmatpush2.bf16.msra.mxu0 0
      %766 = vmatprep.subr.bf16.mxu0 0
      %767 = vmatpush2.bf16.msra.mxu0 0
      %768 = vmatprep.subr.bf16.mxu0 0
      %769 = vmatpush2.bf16.msra.mxu0 0
      %770 = vmatprep.subr.bf16.mxu0 0
      %771 = vmatpush2.bf16.msra.mxu0 0
      %772 = vmatprep.subr.bf16.mxu0 0
      %773 = vmatpush2.bf16.msra.mxu0 0
      %774 = vmatprep.mubr.bf16.mxu0 0
      %775 = vmatmul.mubr.bf16.gmra.mxu0 %v734
      %v776 = vpop.f32.mrf.mxu0
      %v777 = vadd.f32 %v490, %v776
      %v778 = vpop.f32.mrf.mxu0
      %v779 = vadd.f32 %v490, %v778
      %v780 = vpop.f32.mrf.mxu0
      %v781 = vpop.f32.mrf.mxu0
      %782 = vdwg.mxu0
      %v783 = vmax.f32 %v777, 0.0
      %v784 = vmax.f32 %v779, 0.0
      %v785 = vld [vmem:[%s7] sm:$0x3]
      %v786 = vpack.c.bf16 %v783, %v783
      %v787 = vpack.c.bf16 %v784, %v784
      %v789 = vsel %vm430, %v785, 0
      %v792 = vsel %vm434, %v786, 0
      %v795 = vsel %vm434, %v787, 0
      %797 = vmatprep.subr.bf16.mxu0 0
      %798 = vmatpush1.bf16.msra.mxu0 0
      %799 = vmatprep.subr.bf16.mxu0 0
      %800 = vmatpush1.bf16.msra.mxu0 0
      %801 = vmatprep.subr.bf16.mxu0 0
      %802 = vmatpush1.bf16.msra.mxu0 0
      %803 = vmatprep.subr.bf16.mxu0 0
      %804 = vmatpush1.bf16.msra.mxu0 0
      %805 = vmatprep.subr.bf16.mxu0 0
      %806 = vmatpush1.bf16.msra.mxu0 0
      %807 = vmatprep.subr.bf16.mxu0 0
      %808 = vmatpush1.bf16.msra.mxu0 0
      %809 = vmatprep.subr.bf16.mxu0 0
      %810 = vmatpush1.bf16.msra.mxu0 0
      %811 = vmatprep.subr.bf16.mxu0 %v795
      %812 = vmatpush1.bf16.msra.mxu0 %v792
      %813 = vmatprep.subr.bf16.mxu0 0
      %814 = vmatpush2.bf16.msra.mxu0 0
      %815 = vmatprep.subr.bf16.mxu0 0
      %816 = vmatpush2.bf16.msra.mxu0 0
      %817 = vmatprep.subr.bf16.mxu0 0
      %818 = vmatpush2.bf16.msra.mxu0 0
      %819 = vmatprep.subr.bf16.mxu0 0
      %820 = vmatpush2.bf16.msra.mxu0 0
      %821 = vmatprep.subr.bf16.mxu0 0
      %822 = vmatpush2.bf16.msra.mxu0 0
      %823 = vmatprep.subr.bf16.mxu0 0
      %824 = vmatpush2.bf16.msra.mxu0 0
      %825 = vmatprep.subr.bf16.mxu0 0
      %826 = vmatpush2.bf16.msra.mxu0 0
      %827 = vmatprep.subr.bf16.mxu0 0
      %828 = vmatpush2.bf16.msra.mxu0 0
      %829 = vmatprep.mubr.bf16.mxu0 0
      %830 = vmatmul.mubr.bf16.gmra.mxu0 %v789
      %v831 = vpop.f32.mrf.mxu0
      %v832 = vadd.f32 %v692, %v831
      %v833 = vpop.f32.mrf.mxu0
      %v834 = vadd.f32 %v693, %v833
      %v835 = vpop.f32.mrf.mxu0
      %v836 = vpop.f32.mrf.mxu0
      %837 = vdwg.mxu0
      %v840 = vcombine.low %v832, %v834
      %842 = vst [vmem:[%s386] sm:$0xff] %v840
      %s843 = scalar_lea.vmem %s5, 2
      %v844 = vld [vmem:[%s843] sm:$0x3]
      %v846 = vsel %vm430, %v844, 0
      %848 = vmatprep.subr.bf16.mxu0 0
      %849 = vmatpush1.bf16.msra.mxu0 0
      %850 = vmatprep.subr.bf16.mxu0 0
      %851 = vmatpush1.bf16.msra.mxu0 0
      %852 = vmatprep.subr.bf16.mxu0 0
      %853 = vmatpush1.bf16.msra.mxu0 0
      %854 = vmatprep.subr.bf16.mxu0 0
      %855 = vmatpush1.bf16.msra.mxu0 0
      %856 = vmatprep.subr.bf16.mxu0 0
      %857 = vmatpush1.bf16.msra.mxu0 0
      %858 = vmatprep.subr.bf16.mxu0 0
      %859 = vmatpush1.bf16.msra.mxu0 0
      %860 = vmatprep.subr.bf16.mxu0 0
      %861 = vmatpush1.bf16.msra.mxu0 0
      %862 = vmatprep.subr.bf16.mxu0 %v740
      %863 = vmatpush1.bf16.msra.mxu0 %v737
      %864 = vmatprep.subr.bf16.mxu0 0
      %865 = vmatpush2.bf16.msra.mxu0 0
      %866 = vmatprep.subr.bf16.mxu0 0
      %867 = vmatpush2.bf16.msra.mxu0 0
      %868 = vmatprep.subr.bf16.mxu0 0
      %869 = vmatpush2.bf16.msra.mxu0 0
      %870 = vmatprep.subr.bf16.mxu0 0
      %871 = vmatpush2.bf16.msra.mxu0 0
      %872 = vmatprep.subr.bf16.mxu0 0
      %873 = vmatpush2.bf16.msra.mxu0 0
      %874 = vmatprep.subr.bf16.mxu0 0
      %875 = vmatpush2.bf16.msra.mxu0 0
      %876 = vmatprep.subr.bf16.mxu0 0
      %877 = vmatpush2.bf16.msra.mxu0 0
      %878 = vmatprep.subr.bf16.mxu0 0
      %879 = vmatpush2.bf16.msra.mxu0 0
      %880 = vmatprep.mubr.bf16.mxu0 0
      %881 = vmatmul.mubr.bf16.gmra.mxu0 %v846
      %v882 = vpop.f32.mrf.mxu0
      %v883 = vadd.f32 %v490, %v882
      %v884 = vpop.f32.mrf.mxu0
      %v885 = vadd.f32 %v490, %v884
      %v886 = vpop.f32.mrf.mxu0
      %v887 = vpop.f32.mrf.mxu0
      %888 = vdwg.mxu0
      %v889 = vmax.f32 %v883, 0.0
      %v890 = vmax.f32 %v885, 0.0
      %v891 = vld [vmem:[%s7] sm:$0x3]
      %v892 = vpack.c.bf16 %v889, %v889
      %v893 = vpack.c.bf16 %v890, %v890
      %v895 = vsel %vm430, %v891, 0
      %v898 = vsel %vm434, %v892, 0
      %v901 = vsel %vm434, %v893, 0
      %903 = vmatprep.subr.bf16.mxu0 0
      %904 = vmatpush1.bf16.msra.mxu0 0
      %905 = vmatprep.subr.bf16.mxu0 0
      %906 = vmatpush1.bf16.msra.mxu0 0
      %907 = vmatprep.subr.bf16.mxu0 0
      %908 = vmatpush1.bf16.msra.mxu0 0
      %909 = vmatprep.subr.bf16.mxu0 0
      %910 = vmatpush1.bf16.msra.mxu0 0
      %911 = vmatprep.subr.bf16.mxu0 0
      %912 = vmatpush1.bf16.msra.mxu0 0
      %913 = vmatprep.subr.bf16.mxu0 0
      %914 = vmatpush1.bf16.msra.mxu0 0
      %915 = vmatprep.subr.bf16.mxu0 0
      %916 = vmatpush1.bf16.msra.mxu0 0
      %917 = vmatprep.subr.bf16.mxu0 %v901
      %918 = vmatpush1.bf16.msra.mxu0 %v898
      %919 = vmatprep.subr.bf16.mxu0 0
      %920 = vmatpush2.bf16.msra.mxu0 0
      %921 = vmatprep.subr.bf16.mxu0 0
      %922 = vmatpush2.bf16.msra.mxu0 0
      %923 = vmatprep.subr.bf16.mxu0 0
      %924 = vmatpush2.bf16.msra.mxu0 0
      %925 = vmatprep.subr.bf16.mxu0 0
      %926 = vmatpush2.bf16.msra.mxu0 0
      %927 = vmatprep.subr.bf16.mxu0 0
      %928 = vmatpush2.bf16.msra.mxu0 0
      %929 = vmatprep.subr.bf16.mxu0 0
      %930 = vmatpush2.bf16.msra.mxu0 0
      %931 = vmatprep.subr.bf16.mxu0 0
      %932 = vmatpush2.bf16.msra.mxu0 0
      %933 = vmatprep.subr.bf16.mxu0 0
      %934 = vmatpush2.bf16.msra.mxu0 0
      %935 = vmatprep.mubr.bf16.mxu0 0
      %936 = vmatmul.mubr.bf16.gmra.mxu0 %v895
      %v937 = vpop.f32.mrf.mxu0
      %v938 = vadd.f32 %v730, %v937
      %v939 = vpop.f32.mrf.mxu0
      %v940 = vadd.f32 %v731, %v939
      %v941 = vpop.f32.mrf.mxu0
      %v942 = vpop.f32.mrf.mxu0
      %943 = vdwg.mxu0
      %v946 = vcombine.low %v938, %v940
      %s948 = scalar_lea.vmem %s386, 8
      %949 = vst [vmem:[%s948] sm:$0xff] %v946
      %v950 = vld [vmem:[%s669] sm:$0xff]
      %v951 = vld [vmem:[%s669 + $0x8] sm:$0xf]
      %v953 = vsub.f32 %v950, %v662
      %v955 = vcombine.high %v953, %v953
      %v957 = vmul.f32 %v680, %v953
      %v958 = vmul.f32 %v684, %v955
      %v959 = vadd.f32 %v638, %v957
      %v960 = vadd.f32 %v639, %v958
      %961 = vrot.lane.b32.xlu0 %v662, 2
      %v962 = vpop.permute.xlu0 %961
      %v963 = vrot.slane %v962, 4
      %v964 = vsel %vm697, %v963, %v962
      %v967 = vsub.f32 %v950, %v964
      %v968 = vsub.f32 %v951, %v963
      %v971 = vcombine.high %v967, %v967
      %972 = vrot.lane.b32.xlu0 %v967, 126
      %v973 = vpop.permute.xlu0 %972
      %974 = vrot.lane.b32.xlu0 %v971, 126
      %v975 = vpop.permute.xlu0 %974
      %976 = vrot.lane.b32.xlu0 %v968, 126
      %v977 = vpop.permute.xlu0 %976
      %v978 = vsel %vm723, %v973, %v975
      %v979 = vsel %vm723, %v975, %v977
      %v982 = vmul.f32 %v707, %v978
      %v983 = vmul.f32 %v711, %v979
      %v984 = vadd.f32 %v638, %v982
      %v985 = vadd.f32 %v639, %v983
      %s986 = scalar_lea.vmem %s5, 4
      %v987 = vld [vmem:[%s986] sm:$0x3]
      %v989 = vsel %vm430, %v987, 0
      %991 = vmatprep.subr.bf16.mxu0 0
      %992 = vmatpush1.bf16.msra.mxu0 0
      %993 = vmatprep.subr.bf16.mxu0 0
      %994 = vmatpush1.bf16.msra.mxu0 0
      %995 = vmatprep.subr.bf16.mxu0 0
      %996 = vmatpush1.bf16.msra.mxu0 0
      %997 = vmatprep.subr.bf16.mxu0 0
      %998 = vmatpush1.bf16.msra.mxu0 0
      %999 = vmatprep.subr.bf16.mxu0 0
      %1000 = vmatpush1.bf16.msra.mxu0 0
      %1001 = vmatprep.subr.bf16.mxu0 0
      %1002 = vmatpush1.bf16.msra.mxu0 0
      %1003 = vmatprep.subr.bf16.mxu0 0
      %1004 = vmatpush1.bf16.msra.mxu0 0
      %1005 = vmatprep.subr.bf16.mxu0 %v740
      %1006 = vmatpush1.bf16.msra.mxu0 %v737
      %1007 = vmatprep.subr.bf16.mxu0 0
      %1008 = vmatpush2.bf16.msra.mxu0 0
      %1009 = vmatprep.subr.bf16.mxu0 0
      %1010 = vmatpush2.bf16.msra.mxu0 0
      %1011 = vmatprep.subr.bf16.mxu0 0
      %1012 = vmatpush2.bf16.msra.mxu0 0
      %1013 = vmatprep.subr.bf16.mxu0 0
      %1014 = vmatpush2.bf16.msra.mxu0 0
      %1015 = vmatprep.subr.bf16.mxu0 0
      %1016 = vmatpush2.bf16.msra.mxu0 0
      %1017 = vmatprep.subr.bf16.mxu0 0
      %1018 = vmatpush2.bf16.msra.mxu0 0
      %1019 = vmatprep.subr.bf16.mxu0 0
      %1020 = vmatpush2.bf16.msra.mxu0 0
      %1021 = vmatprep.subr.bf16.mxu0 0
      %1022 = vmatpush2.bf16.msra.mxu0 0
      %1023 = vmatprep.mubr.bf16.mxu0 0
      %1024 = vmatmul.mubr.bf16.gmra.mxu0 %v989
      %v1025 = vpop.f32.mrf.mxu0
      %v1026 = vadd.f32 %v490, %v1025
      %v1027 = vpop.f32.mrf.mxu0
      %v1028 = vadd.f32 %v490, %v1027
      %v1029 = vpop.f32.mrf.mxu0
      %v1030 = vpop.f32.mrf.mxu0
      %1031 = vdwg.mxu0
      %v1032 = vmax.f32 %v1026, 0.0
      %v1033 = vmax.f32 %v1028, 0.0
      %v1034 = vld [vmem:[%s7] sm:$0x3]
      %v1035 = vpack.c.bf16 %v1032, %v1032
      %v1036 = vpack.c.bf16 %v1033, %v1033
      %v1038 = vsel %vm430, %v1034, 0
      %v1041 = vsel %vm434, %v1035, 0
      %v1044 = vsel %vm434, %v1036, 0
      %1046 = vmatprep.subr.bf16.mxu0 0
      %1047 = vmatpush1.bf16.msra.mxu0 0
      %1048 = vmatprep.subr.bf16.mxu0 0
      %1049 = vmatpush1.bf16.msra.mxu0 0
      %1050 = vmatprep.subr.bf16.mxu0 0
      %1051 = vmatpush1.bf16.msra.mxu0 0
      %1052 = vmatprep.subr.bf16.mxu0 0
      %1053 = vmatpush1.bf16.msra.mxu0 0
      %1054 = vmatprep.subr.bf16.mxu0 0
      %1055 = vmatpush1.bf16.msra.mxu0 0
      %1056 = vmatprep.subr.bf16.mxu0 0
      %1057 = vmatpush1.bf16.msra.mxu0 0
      %1058 = vmatprep.subr.bf16.mxu0 0
      %1059 = vmatpush1.bf16.msra.mxu0 0
      %1060 = vmatprep.subr.bf16.mxu0 %v1044
      %1061 = vmatpush1.bf16.msra.mxu0 %v1041
      %1062 = vmatprep.subr.bf16.mxu0 0
      %1063 = vmatpush2.bf16.msra.mxu0 0
      %1064 = vmatprep.subr.bf16.mxu0 0
      %1065 = vmatpush2.bf16.msra.mxu0 0
      %1066 = vmatprep.subr.bf16.mxu0 0
      %1067 = vmatpush2.bf16.msra.mxu0 0
      %1068 = vmatprep.subr.bf16.mxu0 0
      %1069 = vmatpush2.bf16.msra.mxu0 0
      %1070 = vmatprep.subr.bf16.mxu0 0
      %1071 = vmatpush2.bf16.msra.mxu0 0
      %1072 = vmatprep.subr.bf16.mxu0 0
      %1073 = vmatpush2.bf16.msra.mxu0 0
      %1074 = vmatprep.subr.bf16.mxu0 0
      %1075 = vmatpush2.bf16.msra.mxu0 0
      %1076 = vmatprep.subr.bf16.mxu0 0
      %1077 = vmatpush2.bf16.msra.mxu0 0
      %1078 = vmatprep.mubr.bf16.mxu0 0
      %1079 = vmatmul.mubr.bf16.gmra.mxu0 %v1038
      %v1080 = vpop.f32.mrf.mxu0
      %v1081 = vadd.f32 %v959, %v1080
      %v1082 = vpop.f32.mrf.mxu0
      %v1083 = vadd.f32 %v960, %v1082
      %v1084 = vpop.f32.mrf.mxu0
      %v1085 = vpop.f32.mrf.mxu0
      %1086 = vdwg.mxu0
      %v1089 = vcombine.low %v1081, %v1083
      %s1091 = scalar_lea.vmem %s386, 16
      %1092 = vst [vmem:[%s1091] sm:$0xff] %v1089
      %s1093 = scalar_lea.vmem %s5, 6
      %v1094 = vld [vmem:[%s1093] sm:$0x3]
      %v1096 = vsel %vm430, %v1094, 0
      %1098 = vmatprep.subr.bf16.mxu0 0
      %1099 = vmatpush1.bf16.msra.mxu0 0
      %1100 = vmatprep.subr.bf16.mxu0 0
      %1101 = vmatpush1.bf16.msra.mxu0 0
      %1102 = vmatprep.subr.bf16.mxu0 0
      %1103 = vmatpush1.bf16.msra.mxu0 0
      %1104 = vmatprep.subr.bf16.mxu0 0
      %1105 = vmatpush1.bf16.msra.mxu0 0
      %1106 = vmatprep.subr.bf16.mxu0 0
      %1107 = vmatpush1.bf16.msra.mxu0 0
      %1108 = vmatprep.subr.bf16.mxu0 0
      %1109 = vmatpush1.bf16.msra.mxu0 0
      %1110 = vmatprep.subr.bf16.mxu0 0
      %1111 = vmatpush1.bf16.msra.mxu0 0
      %1112 = vmatprep.subr.bf16.mxu0 %v740
      %1113 = vmatpush1.bf16.msra.mxu0 %v737
      %1114 = vmatprep.subr.bf16.mxu0 0
      %1115 = vmatpush2.bf16.msra.mxu0 0
      %1116 = vmatprep.subr.bf16.mxu0 0
      %1117 = vmatpush2.bf16.msra.mxu0 0
      %1118 = vmatprep.subr.bf16.mxu0 0
      %1119 = vmatpush2.bf16.msra.mxu0 0
      %1120 = vmatprep.subr.bf16.mxu0 0
      %1121 = vmatpush2.bf16.msra.mxu0 0
      %1122 = vmatprep.subr.bf16.mxu0 0
      %1123 = vmatpush2.bf16.msra.mxu0 0
      %1124 = vmatprep.subr.bf16.mxu0 0
      %1125 = vmatpush2.bf16.msra.mxu0 0
      %1126 = vmatprep.subr.bf16.mxu0 0
      %1127 = vmatpush2.bf16.msra.mxu0 0
      %1128 = vmatprep.subr.bf16.mxu0 0
      %1129 = vmatpush2.bf16.msra.mxu0 0
      %1130 = vmatprep.mubr.bf16.mxu0 0
      %1131 = vmatmul.mubr.bf16.gmra.mxu0 %v1096
      %v1132 = vpop.f32.mrf.mxu0
      %v1133 = vadd.f32 %v490, %v1132
      %v1134 = vpop.f32.mrf.mxu0
      %v1135 = vadd.f32 %v490, %v1134
      %v1136 = vpop.f32.mrf.mxu0
      %v1137 = vpop.f32.mrf.mxu0
      %1138 = vdwg.mxu0
      %v1139 = vmax.f32 %v1133, 0.0
      %v1140 = vmax.f32 %v1135, 0.0
      %v1141 = vld [vmem:[%s7] sm:$0x3]
      %v1142 = vpack.c.bf16 %v1139, %v1139
      %v1143 = vpack.c.bf16 %v1140, %v1140
      %v1145 = vsel %vm430, %v1141, 0
      %v1148 = vsel %vm434, %v1142, 0
      %v1151 = vsel %vm434, %v1143, 0
      %1153 = vmatprep.subr.bf16.mxu0 0
      %1154 = vmatpush1.bf16.msra.mxu0 0
      %1155 = vmatprep.subr.bf16.mxu0 0
      %1156 = vmatpush1.bf16.msra.mxu0 0
      %1157 = vmatprep.subr.bf16.mxu0 0
      %1158 = vmatpush1.bf16.msra.mxu0 0
      %1159 = vmatprep.subr.bf16.mxu0 0
      %1160 = vmatpush1.bf16.msra.mxu0 0
      %1161 = vmatprep.subr.bf16.mxu0 0
      %1162 = vmatpush1.bf16.msra.mxu0 0
      %1163 = vmatprep.subr.bf16.mxu0 0
      %1164 = vmatpush1.bf16.msra.mxu0 0
      %1165 = vmatprep.subr.bf16.mxu0 0
      %1166 = vmatpush1.bf16.msra.mxu0 0
      %1167 = vmatprep.subr.bf16.mxu0 %v1151
      %1168 = vmatpush1.bf16.msra.mxu0 %v1148
      %1169 = vmatprep.subr.bf16.mxu0 0
      %1170 = vmatpush2.bf16.msra.mxu0 0
      %1171 = vmatprep.subr.bf16.mxu0 0
      %1172 = vmatpush2.bf16.msra.mxu0 0
      %1173 = vmatprep.subr.bf16.mxu0 0
      %1174 = vmatpush2.bf16.msra.mxu0 0
      %1175 = vmatprep.subr.bf16.mxu0 0
      %1176 = vmatpush2.bf16.msra.mxu0 0
      %1177 = vmatprep.subr.bf16.mxu0 0
      %1178 = vmatpush2.bf16.msra.mxu0 0
      %1179 = vmatprep.subr.bf16.mxu0 0
      %1180 = vmatpush2.bf16.msra.mxu0 0
      %1181 = vmatprep.subr.bf16.mxu0 0
      %1182 = vmatpush2.bf16.msra.mxu0 0
      %1183 = vmatprep.subr.bf16.mxu0 0
      %1184 = vmatpush2.bf16.msra.mxu0 0
      %1185 = vmatprep.mubr.bf16.mxu0 0
      %1186 = vmatmul.mubr.bf16.gmra.mxu0 %v1145
      %v1187 = vpop.f32.mrf.mxu0
      %v1188 = vadd.f32 %v984, %v1187
      %v1189 = vpop.f32.mrf.mxu0
      %v1190 = vadd.f32 %v985, %v1189
      %v1191 = vpop.f32.mrf.mxu0
      %v1192 = vpop.f32.mrf.mxu0
      %1193 = vdwg.mxu0
      %v1196 = vcombine.low %v1188, %v1190
      %s1198 = scalar_lea.vmem %s386, 24
      %1199 = vst [vmem:[%s1198] sm:$0xff] %v1196
      %p1200 = scmp.lt.s32.totalorder %s22, 1
      %s1201 = scalar_select %p1200, %s22, 1
      %s1202 = smul.addr %s1201, 8
      %s1203 = smul.addr %s1202, 4
      %s1204 = scalar_lea.vmem %s11, %s1203
      // Predicated region
      $region65: #{apply.1} parent=63 // pred_check
        %p1205 = pneg %p276
      $region66: #{apply.1} parent=63 // pred_check_branch
        %1207 = sbr.rel (%p1205) target = $region68
      $region67: #{apply.1} parent=63 // pred_region
        _
      $region68: #{apply.1} parent=63 // pred_fallthru
        _
    $region64: #{apply.1} parent=5 // pred_fallthru
      _
    %p1208 = scmp.le.s32.totalorder 2, %s17
    // Predicated region
    $region69: #{apply.1} parent=5 // pred_check
      %p1209 = pneg %p1208
    $region70: #{apply.1} parent=5 // pred_check_branch
      %1211 = sbr.rel (%p1209) target = $region72
    $region71: #{apply.1} parent=5 // pred_region
      %s1212 = ssub.s32 %s17, 2
      // Predicated region
      $region73: #{apply.1} parent=71 // pred_check
        %p1213 = pneg %p282
      $region74: #{apply.1} parent=71 // pred_check_branch
        %1215 = sbr.rel (%p1213) target = $region76
      $region75: #{apply.1} parent=71 // pred_region
        %p1216 = scmp.lt.s32.totalorder %s23, 1
        %s1217 = scalar_select %p1216, %s23, 1
        %s1218 = smul.addr %s1217, 8
        %s1219 = smul.addr %s1218, 4
        %s1220 = scalar_lea.vmem %s11, %s1219
      $region76: #{apply.1} parent=71 // pred_fallthru
        _
    $region72: #{apply.1} parent=5 // pred_fallthru
      _
  $region6: #{apply.1} parent=0 // loop_footer
    %s21 = sadd.s32 1, %s17
  $region7: #{apply.1} parent=0 // loop_footer_branch
    %16 = sbr.rel target = $region3
  $region8: #{apply.1} parent=0 // loop_exit
    _

</llo_original>
